<compile_context>
chip_gen: v7x
topology: tpu7x:2x2x1
jax: 0.10.0
libtpu: 0.0.40
codegen_flags: <defaults>
</compile_context>

<pallas_src>
import functools

import jax
import jax.numpy as jnp
from jax.experimental import pallas as pl
from jax.experimental.pallas import tpu as pltpu

_HEAD_PAD = 128  # lane-dense padded width of the fused two-head output


# --------------------------------------------------------------------------------------
# Kernel: one grid step == one encoder layer for one batch block
# --------------------------------------------------------------------------------------
def _fused_layer_kernel(feat_ref, maskb_ref,
                        we_ref, be_ref,
                        wqkv_ref, bqkv_ref, wo_ref, bo_ref, ln1g_ref, ln1b_ref,
                        w1_ref, b1_ref, w2_ref, b2_ref, ln2g_ref, ln2b_ref,
                        wh1_ref, bh1_ref, wh2_ref, bh2_ref,
                        out_ref,
                        x_ref,
                        *, num_heads, seq_len):
    l = pl.program_id(1)                     # layer index (arbitrary / carried axis)
    H = num_heads
    S = seq_len
    Nb, D = x_ref.shape                      # rows of this batch block, model dim
    Bb = Nb // S                             # batch elements in this block
    hd = D // H
    scale = 1.0 / float(hd) ** 0.5
    cdt = wqkv_ref.dtype                     # matmul (storage) dtype: bf16 or f32

    def layer_norm(y, g, b):
        mu = jnp.mean(y, axis=-1, keepdims=True)
        var = jnp.mean((y - mu) ** 2, axis=-1, keepdims=True)
        return (y - mu) * jax.lax.rsqrt(var + 1e-5) * g + b

    # ---- l == 0: fused atom/coords embedding into the persistent activation -----
    @pl.when(l == 0)
    def _():
        x_ref[...] = (jnp.dot(feat_ref[...], we_ref[...],
                              preferred_element_type=jnp.float32) + be_ref[...])

    x = x_ref[...]                                                   # (Nb, D) f32

    # ---- fused QKV: one lane-dense (Nb, D) @ (D, 3D) matmul ----------------------
    qkv = (jnp.dot(x.astype(cdt), wqkv_ref[0],
                   preferred_element_type=jnp.float32) + bqkv_ref[0])   # (Nb, 3D) f32

    # ---- per-head attention core (heads sliced off the lane axis; no broadcast) --
    bias = maskb_ref[...]                                            # (Bb, 1, S) f32
    ctx_heads = []
    for h in range(H):                       # static unroll; H is a small constant
        qh = qkv[:, h * hd:(h + 1) * hd].reshape(Bb, S, hd)
        kh = qkv[:, D + h * hd:D + (h + 1) * hd].reshape(Bb, S, hd)
        vh = qkv[:, 2 * D + h * hd:2 * D + (h + 1) * hd].reshape(Bb, S, hd)
        s = (jnp.einsum('bqd,bkd->bqk', qh, kh,
                        preferred_element_type=jnp.float32) * scale + bias)
        s = s - jnp.max(s, axis=-1, keepdims=True)
        e = jnp.exp(s)
        p = e * pl.reciprocal(jnp.sum(e, axis=-1, keepdims=True))    # exact (EUP)
        ctx_heads.append(
            jnp.einsum('bqk,bkd->bqd', p, vh,
                       preferred_element_type=jnp.float32).reshape(Nb, hd))
    ctx = jnp.concatenate(ctx_heads, axis=-1)                        # (Nb, D) f32

    # ---- single K=D output projection + post-norm residual block 1 ---------------
    attn = (jnp.dot(ctx.astype(cdt), wo_ref[0],
                    preferred_element_type=jnp.float32) + bo_ref[0])
    x = layer_norm(x + attn, ln1g_ref[0], ln1b_ref[0])

    # ---- feed-forward + post-norm residual block 2 --------------------------------
    hid = jnp.maximum(
        jnp.dot(x.astype(cdt), w1_ref[0], preferred_element_type=jnp.float32)
        + b1_ref[0], 0.0)
    ff = (jnp.dot(hid.astype(cdt), w2_ref[0],
                  preferred_element_type=jnp.float32) + b2_ref[0])
    x = layer_norm(x + ff, ln2g_ref[0], ln2b_ref[0])
    x_ref[...] = x                                                   # carry to l+1

    # ---- l == L-1: fused output heads on the CLS token ----------------------------
    @pl.when(l == pl.num_programs(1) - 1)
    def _():
        cls = x.reshape(Bb, S, D)[:, 0, :]                           # (Bb, D) strided slice
        hcls = jnp.maximum(
            jnp.dot(cls.astype(cdt), wh1_ref[...],
                    preferred_element_type=jnp.float32) + bh1_ref[...], 0.0)
        out_ref[0] = (jnp.dot(hcls.astype(cdt), wh2_ref[...],
                              preferred_element_type=jnp.float32) + bh2_ref[...])


# --------------------------------------------------------------------------------------
# Wrapper
# --------------------------------------------------------------------------------------
@functools.partial(jax.jit, static_argnames=("num_heads", "num_batch_blocks"))
def crystal_transformer_forward(atom, coords, mask, packed, *, num_heads,
                                num_batch_blocks=None):
    """atom (B,S,100), coords (B,S,3), mask (B,S) bool True=padding -> ((B,1),(B,1))."""
    B, S, A = atom.shape
    C = coords.shape[-1]
    L, D, _ = packed["wqkv"].shape
    F = packed["w1"].shape[2]
    H = num_heads
    hd = D // H

    # sublane-align the sequence with fully-masked padding keys (safe: bias -1e30)
    S_pad = ((S + 7) // 8) * 8
    if S_pad != S:
        pad = S_pad - S
        atom = jnp.pad(atom, ((0, 0), (0, pad), (0, 0)))
        coords = jnp.pad(coords, ((0, 0), (0, pad), (0, 0)))
        mask = jnp.pad(mask, ((0, 0), (0, pad)), constant_values=True)

    # parallel batch blocking (2 blocks -> both v7x TensorCores; use 1 on v5e/v6e
    # to avoid re-streaming the layer weights once per block on a single core)
    if num_batch_blocks is None:
        num_batch_blocks = 2 if (B % 2 == 0 and B > 1) else 1
    assert B % num_batch_blocks == 0
    batch_block = B // num_batch_blocks
    Nb = batch_block * S_pad                                          # rows per block

    # wrapper-side layout plumbing (cheap XLA ops)
    feat = (jnp.concatenate([atom, coords], axis=-1)
            .reshape(B * S_pad, A + C).astype(packed["we"].dtype))    # (B*S, 103)
    maskbias = (jnp.where(mask, -1e30, 0.0)
                .astype(jnp.float32).reshape(B, 1, S_pad))            # (B, 1, S) f32

    # ---- grid & specs: ("parallel" batch-block axis, "arbitrary" layer axis) -----
    grid = (num_batch_blocks, L)
    const2 = lambda bb, l: (0, 0)
    layer3 = lambda bb, l: (l, 0, 0)

    def layer_spec(arr):
        return pl.BlockSpec((1,) + tuple(arr.shape[1:]), layer3)

    in_specs = [
        pl.BlockSpec((Nb, A + C), lambda bb, l: (bb, 0)),             # feat
        pl.BlockSpec((batch_block, 1, S_pad), lambda bb, l: (bb, 0, 0)),  # mask bias
        pl.BlockSpec(tuple(packed["we"].shape), const2),              # fused embed W
        pl.BlockSpec(tuple(packed["be"].shape), const2),
        layer_spec(packed["wqkv"]), layer_spec(packed["bqkv"]),
        layer_spec(packed["wo"]), layer_spec(packed["bo"]),
        layer_spec(packed["ln1g"]), layer_spec(packed["ln1b"]),
        layer_spec(packed["w1"]), layer_spec(packed["b1"]),
        layer_spec(packed["w2"]), layer_spec(packed["b2"]),
        layer_spec(packed["ln2g"]), layer_spec(packed["ln2b"]),
        pl.BlockSpec(tuple(packed["wh1"].shape), const2),             # fused heads
        pl.BlockSpec(tuple(packed["bh1"].shape), const2),
        pl.BlockSpec(tuple(packed["wh2"].shape), const2),
        pl.BlockSpec(tuple(packed["bh2"].shape), const2),
    ]
    out_spec = pl.BlockSpec((1, batch_block, _HEAD_PAD), lambda bb, l: (bb, 0, 0))

    # ---- VMEM budget + cost estimate ----------------------------------------------
    def _bytes(a):
        return int(a.size) * a.dtype.itemsize

    layer_keys = ("wqkv", "bqkv", "wo", "bo", "ln1g", "ln1b",
                  "w1", "b1", "w2", "b2", "ln2g", "ln2b")
    per_layer_bytes = sum(_bytes(packed[k]) // L for k in layer_keys)
    static_bytes = (_bytes(feat) // num_batch_blocks
                    + _bytes(maskbias) // num_batch_blocks
                    + sum(_bytes(packed[k]) for k in
                          ("we", "be", "wh1", "bh1", "wh2", "bh2")))
    out_block_bytes = batch_block * _HEAD_PAD * 4
    scratch_bytes = Nb * D * 4
    vmem_limit = int(min(64 << 20,                                    # v7x physical cap
                         2 * (per_layer_bytes + static_bytes + out_block_bytes)
                         + scratch_bytes + (8 << 20)))                # intermediates

    N_total = B * S_pad
    flops = 2 * N_total * (A + C) * D
    flops += L * (2 * N_total * D * 3 * D
                  + 4 * B * H * S_pad * S_pad * hd
                  + 2 * N_total * D * D
                  + 4 * N_total * D * F)
    flops += 2 * B * D * (2 * D) + 2 * B * (2 * D) * _HEAD_PAD
    transcendentals = L * B * H * S_pad * S_pad
    bytes_accessed = (sum(_bytes(v) for v in packed.values())
                      + _bytes(feat) + _bytes(maskbias)
                      + B * _HEAD_PAD * 4)

    kernel = functools.partial(_fused_layer_kernel, num_heads=H, seq_len=S_pad)
    out = pl.pallas_call(
        kernel,
        out_shape=jax.ShapeDtypeStruct((num_batch_blocks, batch_block, _HEAD_PAD),
                                       jnp.float32),
        grid_spec=pltpu.PrefetchScalarGridSpec(
            num_scalar_prefetch=0,
            grid=grid,
            in_specs=in_specs,
            out_specs=out_spec,
            scratch_shapes=[pltpu.VMEM((Nb, D), jnp.float32)]),       # carried activation
        compiler_params=pltpu.CompilerParams(
            dimension_semantics=("parallel", "arbitrary"),
            vmem_limit_bytes=vmem_limit),
        cost_estimate=pl.CostEstimate(flops=int(flops),
                                      transcendentals=int(transcendentals),
                                      bytes_accessed=int(bytes_accessed)),
    )(feat, maskbias,
      packed["we"], packed["be"],
      packed["wqkv"], packed["bqkv"], packed["wo"], packed["bo"],
      packed["ln1g"], packed["ln1b"],
      packed["w1"], packed["b1"], packed["w2"], packed["b2"],
      packed["ln2g"], packed["ln2b"],
      packed["wh1"], packed["bh1"], packed["wh2"], packed["bh2"])

    out = out.reshape(B, _HEAD_PAD)
    return out[:, 0:1], out[:, 1:2]


# --------------------------------------------------------------------------------------
# Parameter init (PyTorch granularity) + packing into the fused-kernel layout
# --------------------------------------------------------------------------------------
def init_params(key, feature_size, num_layers, dim_feedforward):
    D, F = feature_size, dim_feedforward

    def nrm(k, shape, scale=0.05):
        return jax.random.normal(k, shape, jnp.float32) * scale

    keys = iter(jax.random.split(key, 24 + 8 * num_layers))
    params = {
        "wa": nrm(next(keys), (100, D // 2)),
        "ba": nrm(next(keys), (1, D // 2)),
        "wc": nrm(next(keys), (3, D // 2)),
        "bc": nrm(next(keys), (1, D // 2)),
        "layers": [],
    }
    for _ in range(num_layers):
        lp = (
            nrm(next(keys), (D, 3 * D)),          # wqkv   (x @ W convention)
            nrm(next(keys), (1, 3 * D)),          # bqkv
            nrm(next(keys), (D, D)),              # wo
            nrm(next(keys), (1, D)),              # bo
            jnp.ones((1, D), jnp.float32),        # ln1 gamma
            jnp.zeros((1, D), jnp.float32),       # ln1 beta
            nrm(next(keys), (D, F)),              # ffn w1
            nrm(next(keys), (1, F)),              # ffn b1
            nrm(next(keys), (F, D)),              # ffn w2
            nrm(next(keys), (1, D)),              # ffn b2
            jnp.ones((1, D), jnp.float32),        # ln2 gamma
            jnp.zeros((1, D), jnp.float32),       # ln2 beta
        )
        params["layers"].append(lp)
    params["heads"] = (
        nrm(next(keys), (D, D)), nrm(next(keys), (1, D)),   # output_linear1.0
        nrm(next(keys), (D, 1)), nrm(next(keys), (1, 1)),   # output_linear1.2
        nrm(next(keys), (D, D)), nrm(next(keys), (1, D)),   # output_linear2.0
        nrm(next(keys), (D, 1)), nrm(next(keys), (1, 1)),   # output_linear2.2
    )
    return params


def pack_params(params, dtype=jnp.bfloat16):
    """Re-layout PyTorch-granularity params into the fused/stacked kernel layout.

    Matmul weights are cast to `dtype` (default bf16: halves weight DMA bytes);
    biases and layer-norm params stay f32 (tiny; added into f32 accumulators)."""
    wa, ba, wc, bc = params["wa"], params["ba"], params["wc"], params["bc"]
    Dh = wa.shape[1]
    D = 2 * Dh

    # fused embedding: block weight (103, D) so one matmul does atom & coords embeds
    we = jnp.zeros((wa.shape[0] + wc.shape[0], D), jnp.float32)
    we = we.at[:wa.shape[0], :Dh].set(wa)
    we = we.at[wa.shape[0]:, Dh:].set(wc)
    be = jnp.concatenate([ba, bc], axis=-1)                           # (1, D)

    names = ("wqkv", "bqkv", "wo", "bo", "ln1g", "ln1b",
             "w1", "b1", "w2", "b2", "ln2g", "ln2b")
    stk = {k: [] for k in names}
    for lp in params["layers"]:
        for k, v in zip(names, lp):
            stk[k].append(v)
    packed = {k: jnp.stack(v, axis=0) for k, v in stk.items()}        # leading layer axis

    # fused output heads: [head1 | head2] first stage, block-diag lane-padded 2nd stage
    w1a, b1a, w1b, b1b, w2a, b2a, w2b, b2b = params["heads"]
    packed["we"] = we
    packed["be"] = be
    packed["wh1"] = jnp.concatenate([w1a, w2a], axis=1)               # (D, 2D)
    packed["bh1"] = jnp.concatenate([b1a, b2a], axis=1)               # (1, 2D)
    wh2 = jnp.zeros((2 * D, _HEAD_PAD), jnp.float32)
    wh2 = wh2.at[:D, 0:1].set(w1b)
    wh2 = wh2.at[D:, 1:2].set(w2b)
    bh2 = jnp.zeros((1, _HEAD_PAD), jnp.float32)
    bh2 = bh2.at[:, 0:1].set(b1b).at[:, 1:2].set(b2b)
    packed["wh2"] = wh2
    packed["bh2"] = bh2

    for k in ("we", "wqkv", "wo", "w1", "w2", "wh1", "wh2"):
        packed[k] = packed[k].astype(dtype)
    return packed


# --------------------------------------------------------------------------------------
# Pure-JAX reference (for correctness verification)
# --------------------------------------------------------------------------------------
def _layer_norm_ref(x, g, b, eps=1e-5):
    mu = jnp.mean(x, axis=-1, keepdims=True)
    var = jnp.mean((x - mu) ** 2, axis=-1, keepdims=True)
    return (x - mu) * jax.lax.rsqrt(var + eps) * g + b


def reference_forward(atom, coords, mask, params, num_heads):
    D = 2 * params["wa"].shape[1]
    H = num_heads
    hd = D // H
    B, S, _ = atom.shape
    x = jnp.concatenate([atom @ params["wa"] + params["ba"],
                         coords @ params["wc"] + params["bc"]], axis=-1)
    bias = jnp.where(mask, -1e30, 0.0).astype(jnp.float32)[:, None, None, :]
    for (wqkv, bqkv, wo, bo, g1, be1, w1, b1, w2, b2, g2, be2) in params["layers"]:
        qkv = x @ wqkv + bqkv
        q = qkv[..., :D].reshape(B, S, H, hd).transpose(0, 2, 1, 3)
        k = qkv[..., D:2 * D].reshape(B, S, H, hd).transpose(0, 2, 1, 3)
        v = qkv[..., 2 * D:].reshape(B, S, H, hd).transpose(0, 2, 1, 3)
        s = jnp.einsum('bhqd,bhkd->bhqk', q, k) / (hd ** 0.5) + bias
        p = jax.nn.softmax(s, axis=-1)
        ctx = jnp.einsum('bhqk,bhkd->bhqd', p, v).transpose(0, 2, 1, 3).reshape(B, S, D)
        x = _layer_norm_ref(x + ctx @ wo + bo, g1, be1)
        ff = jnp.maximum(x @ w1 + b1, 0.0) @ w2 + b2
        x = _layer_norm_ref(x + ff, g2, be2)
    cls = x[:, 0, :]
    w1a, b1a, w1b, b1b, w2a, b2a, w2b, b2b = params["heads"]
    o1 = jnp.maximum(cls @ w1a + b1a, 0.0) @ w1b + b1b
    o2 = jnp.maximum(cls @ w2a + b2a, 0.0) @ w2b + b2b
    return o1, o2


# --------------------------------------------------------------------------------------
# Demo
# --------------------------------------------------------------------------------------
if __name__ == "__main__":
    feature_size = 32
    num_layers = 2
    num_heads = 4
    dim_feedforward = 64
    B, S = 2, 8

    key = jax.random.PRNGKey(0)
    k_param, k_atom, k_coords = jax.random.split(key, 3)

    params = init_params(k_param, feature_size, num_layers, dim_feedforward)

    atom = jax.random.normal(k_atom, (B, S, 100), jnp.float32)     # one-hot-like atom feats
    coords = jax.random.normal(k_coords, (B, S, 3), jnp.float32)   # fractional coords
    # True = padded position (src_key_padding_mask semantics); pad the tail of batch 1.
    mask = jnp.zeros((B, S), jnp.bool_).at[1, S - 2:].set(True)

    r1, r2 = reference_forward(atom, coords, mask, params, num_heads)

    # --- f32 weights: near-exact parity with the pure-JAX / PyTorch-semantics reference
    packed_f32 = pack_params(params, dtype=jnp.float32)
    o1, o2 = crystal_transformer_forward(atom, coords, mask, packed_f32,
                                         num_heads=num_heads)
    o1 = jax.block_until_ready(o1)
    o2 = jax.block_until_ready(o2)
    assert o1.shape == (B, 1) and o2.shape == (B, 1)
    assert bool(jnp.all(jnp.isfinite(o1))) and bool(jnp.all(jnp.isfinite(o2)))
    assert bool(jnp.allclose(o1, r1, rtol=2e-3, atol=2e-3)), (o1, r1)
    assert bool(jnp.allclose(o2, r2, rtol=2e-3, atol=2e-3)), (o2, r2)

    # --- bf16 weights (default deployment config): halved weight DMA, loose tolerance
    packed_bf16 = pack_params(params, dtype=jnp.bfloat16)
    q1, q2 = crystal_transformer_forward(atom, coords, mask, packed_bf16,
                                         num_heads=num_heads)
    q1 = jax.block_until_ready(q1)
    q2 = jax.block_until_ready(q2)
    assert bool(jnp.all(jnp.isfinite(q1))) and bool(jnp.all(jnp.isfinite(q2)))
    assert bool(jnp.allclose(q1, r1, rtol=5e-2, atol=5e-2)), (q1, r1)
    assert bool(jnp.allclose(q2, r2, rtol=5e-2, atol=5e-2)), (q2, r2)

    print("KERNEL_OK")
</pallas_src>

<mosaic_0001>
module attributes {stable_mosaic.version = 11 : i64} {
  func.func @_fused_layer_kernel(%arg0: i32, %arg1: i32, %arg2: memref<8x103xf32, #tpu.memory_space<vmem>>, %arg3: memref<1x1x8xf32, #tpu.memory_space<vmem>>, %arg4: memref<103x32xf32, #tpu.memory_space<vmem>>, %arg5: memref<1x32xf32, #tpu.memory_space<vmem>>, %arg6: memref<1x32x96xf32, #tpu.memory_space<vmem>>, %arg7: memref<1x1x96xf32, #tpu.memory_space<vmem>>, %arg8: memref<1x32x32xf32, #tpu.memory_space<vmem>>, %arg9: memref<1x1x32xf32, #tpu.memory_space<vmem>>, %arg10: memref<1x1x32xf32, #tpu.memory_space<vmem>>, %arg11: memref<1x1x32xf32, #tpu.memory_space<vmem>>, %arg12: memref<1x32x64xf32, #tpu.memory_space<vmem>>, %arg13: memref<1x1x64xf32, #tpu.memory_space<vmem>>, %arg14: memref<1x64x32xf32, #tpu.memory_space<vmem>>, %arg15: memref<1x1x32xf32, #tpu.memory_space<vmem>>, %arg16: memref<1x1x32xf32, #tpu.memory_space<vmem>>, %arg17: memref<1x1x32xf32, #tpu.memory_space<vmem>>, %arg18: memref<32x64xf32, #tpu.memory_space<vmem>>, %arg19: memref<1x64xf32, #tpu.memory_space<vmem>>, %arg20: memref<64x128xf32, #tpu.memory_space<vmem>>, %arg21: memref<1x128xf32, #tpu.memory_space<vmem>>, %arg22: memref<1x1x128xf32, #tpu.memory_space<vmem>>, %arg23: memref<8x32xf32, #tpu.memory_space<vmem>>) attributes {dimension_semantics = [#tpu.dimension_semantics<parallel>, #tpu.dimension_semantics<arbitrary>], iteration_bounds = array<i64: 2, 2>, scalar_prefetch = 0 : i64, scratch_operands = 1 : i64, tpu.core_type = #tpu.core_type<tc>, window_params = [{transform_indices = @transform_0, window_bounds = array<i64: 8, 103>}, {transform_indices = @transform_1, window_bounds = array<i64: 1, 1, 8>}, {pipeline_mode = #tpu.pipeline_mode<synchronous>, transform_indices = @transform_2, window_bounds = array<i64: 103, 32>}, {pipeline_mode = #tpu.pipeline_mode<synchronous>, transform_indices = @transform_3, window_bounds = array<i64: 1, 32>}, {transform_indices = @transform_4, window_bounds = array<i64: 1, 32, 96>}, {transform_indices = @transform_5, window_bounds = array<i64: 1, 1, 96>}, {transform_indices = @transform_6, window_bounds = array<i64: 1, 32, 32>}, {transform_indices = @transform_7, window_bounds = array<i64: 1, 1, 32>}, {transform_indices = @transform_8, window_bounds = array<i64: 1, 1, 32>}, {transform_indices = @transform_9, window_bounds = array<i64: 1, 1, 32>}, {transform_indices = @transform_10, window_bounds = array<i64: 1, 32, 64>}, {transform_indices = @transform_11, window_bounds = array<i64: 1, 1, 64>}, {transform_indices = @transform_12, window_bounds = array<i64: 1, 64, 32>}, {transform_indices = @transform_13, window_bounds = array<i64: 1, 1, 32>}, {transform_indices = @transform_14, window_bounds = array<i64: 1, 1, 32>}, {transform_indices = @transform_15, window_bounds = array<i64: 1, 1, 32>}, {pipeline_mode = #tpu.pipeline_mode<synchronous>, transform_indices = @transform_16, window_bounds = array<i64: 32, 64>}, {pipeline_mode = #tpu.pipeline_mode<synchronous>, transform_indices = @transform_17, window_bounds = array<i64: 1, 64>}, {pipeline_mode = #tpu.pipeline_mode<synchronous>, transform_indices = @transform_18, window_bounds = array<i64: 64, 128>}, {pipeline_mode = #tpu.pipeline_mode<synchronous>, transform_indices = @transform_19, window_bounds = array<i64: 1, 128>}, {transform_indices = @transform_20, window_bounds = array<i64: 1, 1, 128>}]} {
    %c0_i32 = arith.constant 0 : i32
    %0 = arith.cmpi eq, %arg1, %c0_i32 : i32
    %1 = arith.extui %0 : i1 to i32
    %c0_i32_0 = arith.constant 0 : i32
    %2 = arith.cmpi ne, %1, %c0_i32_0 : i32
    scf.if %2 {
      %c0_78 = arith.constant 0 : index
      %c0_79 = arith.constant 0 : index
      %186 = vector.load %arg2[%c0_78, %c0_79] : memref<8x103xf32, #tpu.memory_space<vmem>>, vector<8x103xf32>
      %c0_80 = arith.constant 0 : index
      %c0_81 = arith.constant 0 : index
      %187 = vector.load %arg4[%c0_80, %c0_81] : memref<103x32xf32, #tpu.memory_space<vmem>>, vector<103x32xf32>
      %cst_82 = arith.constant dense<0.000000e+00> : vector<8x32xf32>
      %188 = tpu.matmul %186, %187, %cst_82 {dimension_numbers = #tpu.dot_dimension_numbers<[1], [0], [0], [1], [0, 0, 1, 1], [], []>} : vector<8x103xf32>, vector<103x32xf32>, vector<8x32xf32> -> vector<8x32xf32>
      %c0_83 = arith.constant 0 : index
      %c0_84 = arith.constant 0 : index
      %189 = vector.load %arg5[%c0_83, %c0_84] : memref<1x32xf32, #tpu.memory_space<vmem>>, vector<1x32xf32>
      %190 = vector.broadcast %189 : vector<1x32xf32> to vector<8x32xf32>
      %191 = arith.addf %188, %190 : vector<8x32xf32>
      %c0_85 = arith.constant 0 : index
      %c0_86 = arith.constant 0 : index
      %192 = vector.load %arg23[%c0_85, %c0_86] : memref<8x32xf32, #tpu.memory_space<vmem>>, vector<8x32xf32>
      tpu.vector_store %arg23[%c0_85, %c0_86], %191 {strides = array<i32>} : memref<8x32xf32, #tpu.memory_space<vmem>>, vector<8x32xf32>,
    } else {
    }
    %c0 = arith.constant 0 : index
    %c0_1 = arith.constant 0 : index
    %3 = vector.load %arg23[%c0, %c0_1] : memref<8x32xf32, #tpu.memory_space<vmem>>, vector<8x32xf32>
    %c0_2 = arith.constant 0 : index
    %c0_3 = arith.constant 0 : index
    %c0_4 = arith.constant 0 : index
    %4 = vector.load %arg6[%c0_2, %c0_3, %c0_4] : memref<1x32x96xf32, #tpu.memory_space<vmem>>, vector<1x32x96xf32>
    %5 = vector.shape_cast %4 : vector<1x32x96xf32> to vector<32x96xf32>
    %cst = arith.constant dense<0.000000e+00> : vector<8x96xf32>
    %6 = tpu.matmul %3, %5, %cst {dimension_numbers = #tpu.dot_dimension_numbers<[1], [0], [0], [1], [0, 0, 1, 1], [], []>} : vector<8x32xf32>, vector<32x96xf32>, vector<8x96xf32> -> vector<8x96xf32>
    %c0_5 = arith.constant 0 : index
    %c0_6 = arith.constant 0 : index
    %c0_7 = arith.constant 0 : index
    %7 = vector.load %arg7[%c0_5, %c0_6, %c0_7] : memref<1x1x96xf32, #tpu.memory_space<vmem>>, vector<1x1x96xf32>
    %8 = vector.shape_cast %7 : vector<1x1x96xf32> to vector<1x96xf32>
    %9 = vector.broadcast %8 : vector<1x96xf32> to vector<8x96xf32>
    %10 = arith.addf %6, %9 : vector<8x96xf32>
    %c0_8 = arith.constant 0 : index
    %c0_9 = arith.constant 0 : index
    %c0_10 = arith.constant 0 : index
    %11 = vector.load %arg3[%c0_8, %c0_9, %c0_10] : memref<1x1x8xf32, #tpu.memory_space<vmem>>, vector<1x1x8xf32>
    %12 = vector.extract_strided_slice %10 {offsets = [0, 0], sizes = [8, 8], strides = [1, 1]} : vector<8x96xf32> to vector<8x8xf32>
    %13 = vector.shape_cast %12 : vector<8x8xf32> to vector<1x8x8xf32>
    %14 = vector.extract_strided_slice %10 {offsets = [0, 32], sizes = [8, 8], strides = [1, 1]} : vector<8x96xf32> to vector<8x8xf32>
    %15 = vector.shape_cast %14 : vector<8x8xf32> to vector<1x8x8xf32>
    %16 = vector.extract_strided_slice %10 {offsets = [0, 64], sizes = [8, 8], strides = [1, 1]} : vector<8x96xf32> to vector<8x8xf32>
    %17 = vector.shape_cast %16 : vector<8x8xf32> to vector<1x8x8xf32>
    "tpu.trace_start"() <{level = 10 : i32, message = "bqd,bkd->bqk"}> : () -> ()
    %cst_11 = arith.constant dense<0.000000e+00> : vector<1x8x8xf32>
    %18 = tpu.matmul %13, %15, %cst_11 {dimension_numbers = #tpu.dot_dimension_numbers<[2], [2], [1], [1], [0, 0, 0, 1, 1, 1], [0], [0]>} : vector<1x8x8xf32>, vector<1x8x8xf32>, vector<1x8x8xf32> -> vector<1x8x8xf32>
    "tpu.trace_stop"() : () -> ()
    %cst_12 = arith.constant 0.353553385 : f32
    %19 = vector.broadcast %cst_12 : f32 to vector<1x8x8xf32>
    %20 = arith.mulf %18, %19 : vector<1x8x8xf32>
    %21 = vector.broadcast %11 : vector<1x1x8xf32> to vector<1x8x8xf32>
    %22 = arith.addf %20, %21 : vector<1x8x8xf32>
    %cst_13 = arith.constant dense<0xFF800000> : vector<1x8xf32>
    %23 = vector.multi_reduction <maximumf>, %22, %cst_13 [2] : vector<1x8x8xf32> to vector<1x8xf32>
    %24 = vector.shape_cast %23 : vector<1x8xf32> to vector<1x8x1xf32>
    %25 = vector.broadcast %24 : vector<1x8x1xf32> to vector<1x8x8xf32>
    %26 = arith.subf %22, %25 : vector<1x8x8xf32>
    %27 = math.exp %26 : vector<1x8x8xf32>
    %cst_14 = arith.constant dense<0.000000e+00> : vector<1x8xf32>
    %28 = vector.multi_reduction <add>, %27, %cst_14 [2] : vector<1x8x8xf32> to vector<1x8xf32>
    %29 = vector.shape_cast %28 : vector<1x8xf32> to vector<1x8x1xf32>
    %30 = tpu.reciprocal %29 : vector<1x8x1xf32> -> vector<1x8x1xf32>
    %31 = vector.broadcast %30 : vector<1x8x1xf32> to vector<1x8x8xf32>
    %32 = arith.mulf %27, %31 : vector<1x8x8xf32>
    "tpu.trace_start"() <{level = 10 : i32, message = "bqk,bkd->bqd"}> : () -> ()
    %cst_15 = arith.constant dense<0.000000e+00> : vector<1x8x8xf32>
    %33 = tpu.matmul %32, %17, %cst_15 {dimension_numbers = #tpu.dot_dimension_numbers<[2], [1], [1], [2], [0, 0, 0, 1, 1, 2], [0], [0]>} : vector<1x8x8xf32>, vector<1x8x8xf32>, vector<1x8x8xf32> -> vector<1x8x8xf32>
    "tpu.trace_stop"() : () -> ()
    %34 = vector.shape_cast %33 : vector<1x8x8xf32> to vector<8x8xf32>
    %35 = vector.extract_strided_slice %10 {offsets = [0, 8], sizes = [8, 8], strides = [1, 1]} : vector<8x96xf32> to vector<8x8xf32>
    %36 = vector.shape_cast %35 : vector<8x8xf32> to vector<1x8x8xf32>
    %37 = vector.extract_strided_slice %10 {offsets = [0, 40], sizes = [8, 8], strides = [1, 1]} : vector<8x96xf32> to vector<8x8xf32>
    %38 = vector.shape_cast %37 : vector<8x8xf32> to vector<1x8x8xf32>
    %39 = vector.extract_strided_slice %10 {offsets = [0, 72], sizes = [8, 8], strides = [1, 1]} : vector<8x96xf32> to vector<8x8xf32>
    %40 = vector.shape_cast %39 : vector<8x8xf32> to vector<1x8x8xf32>
    "tpu.trace_start"() <{level = 10 : i32, message = "bqd,bkd->bqk"}> : () -> ()
    %cst_16 = arith.constant dense<0.000000e+00> : vector<1x8x8xf32>
    %41 = tpu.matmul %36, %38, %cst_16 {dimension_numbers = #tpu.dot_dimension_numbers<[2], [2], [1], [1], [0, 0, 0, 1, 1, 1], [0], [0]>} : vector<1x8x8xf32>, vector<1x8x8xf32>, vector<1x8x8xf32> -> vector<1x8x8xf32>
    "tpu.trace_stop"() : () -> ()
    %cst_17 = arith.constant 0.353553385 : f32
    %42 = vector.broadcast %cst_17 : f32 to vector<1x8x8xf32>
    %43 = arith.mulf %41, %42 : vector<1x8x8xf32>
    %44 = vector.broadcast %11 : vector<1x1x8xf32> to vector<1x8x8xf32>
    %45 = arith.addf %43, %44 : vector<1x8x8xf32>
    %cst_18 = arith.constant dense<0xFF800000> : vector<1x8xf32>
    %46 = vector.multi_reduction <maximumf>, %45, %cst_18 [2] : vector<1x8x8xf32> to vector<1x8xf32>
    %47 = vector.shape_cast %46 : vector<1x8xf32> to vector<1x8x1xf32>
    %48 = vector.broadcast %47 : vector<1x8x1xf32> to vector<1x8x8xf32>
    %49 = arith.subf %45, %48 : vector<1x8x8xf32>
    %50 = math.exp %49 : vector<1x8x8xf32>
    %cst_19 = arith.constant dense<0.000000e+00> : vector<1x8xf32>
    %51 = vector.multi_reduction <add>, %50, %cst_19 [2] : vector<1x8x8xf32> to vector<1x8xf32>
    %52 = vector.shape_cast %51 : vector<1x8xf32> to vector<1x8x1xf32>
    %53 = tpu.reciprocal %52 : vector<1x8x1xf32> -> vector<1x8x1xf32>
    %54 = vector.broadcast %53 : vector<1x8x1xf32> to vector<1x8x8xf32>
    %55 = arith.mulf %50, %54 : vector<1x8x8xf32>
    "tpu.trace_start"() <{level = 10 : i32, message = "bqk,bkd->bqd"}> : () -> ()
    %cst_20 = arith.constant dense<0.000000e+00> : vector<1x8x8xf32>
    %56 = tpu.matmul %55, %40, %cst_20 {dimension_numbers = #tpu.dot_dimension_numbers<[2], [1], [1], [2], [0, 0, 0, 1, 1, 2], [0], [0]>} : vector<1x8x8xf32>, vector<1x8x8xf32>, vector<1x8x8xf32> -> vector<1x8x8xf32>
    "tpu.trace_stop"() : () -> ()
    %57 = vector.shape_cast %56 : vector<1x8x8xf32> to vector<8x8xf32>
    %58 = vector.extract_strided_slice %10 {offsets = [0, 16], sizes = [8, 8], strides = [1, 1]} : vector<8x96xf32> to vector<8x8xf32>
    %59 = vector.shape_cast %58 : vector<8x8xf32> to vector<1x8x8xf32>
    %60 = vector.extract_strided_slice %10 {offsets = [0, 48], sizes = [8, 8], strides = [1, 1]} : vector<8x96xf32> to vector<8x8xf32>
    %61 = vector.shape_cast %60 : vector<8x8xf32> to vector<1x8x8xf32>
    %62 = vector.extract_strided_slice %10 {offsets = [0, 80], sizes = [8, 8], strides = [1, 1]} : vector<8x96xf32> to vector<8x8xf32>
    %63 = vector.shape_cast %62 : vector<8x8xf32> to vector<1x8x8xf32>
    "tpu.trace_start"() <{level = 10 : i32, message = "bqd,bkd->bqk"}> : () -> ()
    %cst_21 = arith.constant dense<0.000000e+00> : vector<1x8x8xf32>
    %64 = tpu.matmul %59, %61, %cst_21 {dimension_numbers = #tpu.dot_dimension_numbers<[2], [2], [1], [1], [0, 0, 0, 1, 1, 1], [0], [0]>} : vector<1x8x8xf32>, vector<1x8x8xf32>, vector<1x8x8xf32> -> vector<1x8x8xf32>
    "tpu.trace_stop"() : () -> ()
    %cst_22 = arith.constant 0.353553385 : f32
    %65 = vector.broadcast %cst_22 : f32 to vector<1x8x8xf32>
    %66 = arith.mulf %64, %65 : vector<1x8x8xf32>
    %67 = vector.broadcast %11 : vector<1x1x8xf32> to vector<1x8x8xf32>
    %68 = arith.addf %66, %67 : vector<1x8x8xf32>
    %cst_23 = arith.constant dense<0xFF800000> : vector<1x8xf32>
    %69 = vector.multi_reduction <maximumf>, %68, %cst_23 [2] : vector<1x8x8xf32> to vector<1x8xf32>
    %70 = vector.shape_cast %69 : vector<1x8xf32> to vector<1x8x1xf32>
    %71 = vector.broadcast %70 : vector<1x8x1xf32> to vector<1x8x8xf32>
    %72 = arith.subf %68, %71 : vector<1x8x8xf32>
    %73 = math.exp %72 : vector<1x8x8xf32>
    %cst_24 = arith.constant dense<0.000000e+00> : vector<1x8xf32>
    %74 = vector.multi_reduction <add>, %73, %cst_24 [2] : vector<1x8x8xf32> to vector<1x8xf32>
    %75 = vector.shape_cast %74 : vector<1x8xf32> to vector<1x8x1xf32>
    %76 = tpu.reciprocal %75 : vector<1x8x1xf32> -> vector<1x8x1xf32>
    %77 = vector.broadcast %76 : vector<1x8x1xf32> to vector<1x8x8xf32>
    %78 = arith.mulf %73, %77 : vector<1x8x8xf32>
    "tpu.trace_start"() <{level = 10 : i32, message = "bqk,bkd->bqd"}> : () -> ()
    %cst_25 = arith.constant dense<0.000000e+00> : vector<1x8x8xf32>
    %79 = tpu.matmul %78, %63, %cst_25 {dimension_numbers = #tpu.dot_dimension_numbers<[2], [1], [1], [2], [0, 0, 0, 1, 1, 2], [0], [0]>} : vector<1x8x8xf32>, vector<1x8x8xf32>, vector<1x8x8xf32> -> vector<1x8x8xf32>
    "tpu.trace_stop"() : () -> ()
    %80 = vector.shape_cast %79 : vector<1x8x8xf32> to vector<8x8xf32>
    %81 = vector.extract_strided_slice %10 {offsets = [0, 24], sizes = [8, 8], strides = [1, 1]} : vector<8x96xf32> to vector<8x8xf32>
    %82 = vector.shape_cast %81 : vector<8x8xf32> to vector<1x8x8xf32>
    %83 = vector.extract_strided_slice %10 {offsets = [0, 56], sizes = [8, 8], strides = [1, 1]} : vector<8x96xf32> to vector<8x8xf32>
    %84 = vector.shape_cast %83 : vector<8x8xf32> to vector<1x8x8xf32>
    %85 = vector.extract_strided_slice %10 {offsets = [0, 88], sizes = [8, 8], strides = [1, 1]} : vector<8x96xf32> to vector<8x8xf32>
    %86 = vector.shape_cast %85 : vector<8x8xf32> to vector<1x8x8xf32>
    "tpu.trace_start"() <{level = 10 : i32, message = "bqd,bkd->bqk"}> : () -> ()
    %cst_26 = arith.constant dense<0.000000e+00> : vector<1x8x8xf32>
    %87 = tpu.matmul %82, %84, %cst_26 {dimension_numbers = #tpu.dot_dimension_numbers<[2], [2], [1], [1], [0, 0, 0, 1, 1, 1], [0], [0]>} : vector<1x8x8xf32>, vector<1x8x8xf32>, vector<1x8x8xf32> -> vector<1x8x8xf32>
    "tpu.trace_stop"() : () -> ()
    %cst_27 = arith.constant 0.353553385 : f32
    %88 = vector.broadcast %cst_27 : f32 to vector<1x8x8xf32>
    %89 = arith.mulf %87, %88 : vector<1x8x8xf32>
    %90 = vector.broadcast %11 : vector<1x1x8xf32> to vector<1x8x8xf32>
    %91 = arith.addf %89, %90 : vector<1x8x8xf32>
    %cst_28 = arith.constant dense<0xFF800000> : vector<1x8xf32>
    %92 = vector.multi_reduction <maximumf>, %91, %cst_28 [2] : vector<1x8x8xf32> to vector<1x8xf32>
    %93 = vector.shape_cast %92 : vector<1x8xf32> to vector<1x8x1xf32>
    %94 = vector.broadcast %93 : vector<1x8x1xf32> to vector<1x8x8xf32>
    %95 = arith.subf %91, %94 : vector<1x8x8xf32>
    %96 = math.exp %95 : vector<1x8x8xf32>
    %cst_29 = arith.constant dense<0.000000e+00> : vector<1x8xf32>
    %97 = vector.multi_reduction <add>, %96, %cst_29 [2] : vector<1x8x8xf32> to vector<1x8xf32>
    %98 = vector.shape_cast %97 : vector<1x8xf32> to vector<1x8x1xf32>
    %99 = tpu.reciprocal %98 : vector<1x8x1xf32> -> vector<1x8x1xf32>
    %100 = vector.broadcast %99 : vector<1x8x1xf32> to vector<1x8x8xf32>
    %101 = arith.mulf %96, %100 : vector<1x8x8xf32>
    "tpu.trace_start"() <{level = 10 : i32, message = "bqk,bkd->bqd"}> : () -> ()
    %cst_30 = arith.constant dense<0.000000e+00> : vector<1x8x8xf32>
    %102 = tpu.matmul %101, %86, %cst_30 {dimension_numbers = #tpu.dot_dimension_numbers<[2], [1], [1], [2], [0, 0, 0, 1, 1, 2], [0], [0]>} : vector<1x8x8xf32>, vector<1x8x8xf32>, vector<1x8x8xf32> -> vector<1x8x8xf32>
    "tpu.trace_stop"() : () -> ()
    %103 = vector.shape_cast %102 : vector<1x8x8xf32> to vector<8x8xf32>
    %104 = tpu.concatenate %34, %57, %80, %103 in 1 : vector<8x8xf32>, vector<8x8xf32>, vector<8x8xf32>, vector<8x8xf32> -> vector<8x32xf32>
    %c0_31 = arith.constant 0 : index
    %c0_32 = arith.constant 0 : index
    %c0_33 = arith.constant 0 : index
    %105 = vector.load %arg8[%c0_31, %c0_32, %c0_33] : memref<1x32x32xf32, #tpu.memory_space<vmem>>, vector<1x32x32xf32>
    %106 = vector.shape_cast %105 : vector<1x32x32xf32> to vector<32x32xf32>
    %cst_34 = arith.constant dense<0.000000e+00> : vector<8x32xf32>
    %107 = tpu.matmul %104, %106, %cst_34 {dimension_numbers = #tpu.dot_dimension_numbers<[1], [0], [0], [1], [0, 0, 1, 1], [], []>} : vector<8x32xf32>, vector<32x32xf32>, vector<8x32xf32> -> vector<8x32xf32>
    %c0_35 = arith.constant 0 : index
    %c0_36 = arith.constant 0 : index
    %c0_37 = arith.constant 0 : index
    %108 = vector.load %arg9[%c0_35, %c0_36, %c0_37] : memref<1x1x32xf32, #tpu.memory_space<vmem>>, vector<1x1x32xf32>
    %109 = vector.shape_cast %108 : vector<1x1x32xf32> to vector<1x32xf32>
    %110 = vector.broadcast %109 : vector<1x32xf32> to vector<8x32xf32>
    %111 = arith.addf %107, %110 : vector<8x32xf32>
    %112 = arith.addf %3, %111 : vector<8x32xf32>
    %c0_38 = arith.constant 0 : index
    %c0_39 = arith.constant 0 : index
    %c0_40 = arith.constant 0 : index
    %113 = vector.load %arg10[%c0_38, %c0_39, %c0_40] : memref<1x1x32xf32, #tpu.memory_space<vmem>>, vector<1x1x32xf32>
    %114 = vector.shape_cast %113 : vector<1x1x32xf32> to vector<1x32xf32>
    %c0_41 = arith.constant 0 : index
    %c0_42 = arith.constant 0 : index
    %c0_43 = arith.constant 0 : index
    %115 = vector.load %arg11[%c0_41, %c0_42, %c0_43] : memref<1x1x32xf32, #tpu.memory_space<vmem>>, vector<1x1x32xf32>
    %116 = vector.shape_cast %115 : vector<1x1x32xf32> to vector<1x32xf32>
    %cst_44 = arith.constant dense<0.000000e+00> : vector<8xf32>
    %117 = vector.multi_reduction <add>, %112, %cst_44 [1] : vector<8x32xf32> to vector<8xf32>
    %118 = vector.shape_cast %117 : vector<8xf32> to vector<8x1xf32>
    %cst_45 = arith.constant 3.200000e+01 : f32
    %119 = vector.broadcast %cst_45 : f32 to vector<8x1xf32>
    %120 = arith.divf %118, %119 : vector<8x1xf32>
    %121 = vector.broadcast %120 : vector<8x1xf32> to vector<8x32xf32>
    %122 = arith.subf %112, %121 : vector<8x32xf32>
    %123 = arith.mulf %122, %122 : vector<8x32xf32>
    %cst_46 = arith.constant dense<0.000000e+00> : vector<8xf32>
    %124 = vector.multi_reduction <add>, %123, %cst_46 [1] : vector<8x32xf32> to vector<8xf32>
    %125 = vector.shape_cast %124 : vector<8xf32> to vector<8x1xf32>
    %cst_47 = arith.constant 3.200000e+01 : f32
    %126 = vector.broadcast %cst_47 : f32 to vector<8x1xf32>
    %127 = arith.divf %125, %126 : vector<8x1xf32>
    %128 = vector.broadcast %120 : vector<8x1xf32> to vector<8x32xf32>
    %129 = arith.subf %112, %128 : vector<8x32xf32>
    %cst_48 = arith.constant 9.99999974E-6 : f32
    %130 = vector.broadcast %cst_48 : f32 to vector<8x1xf32>
    %131 = arith.addf %127, %130 : vector<8x1xf32>
    %132 = math.rsqrt %131 : vector<8x1xf32>
    %133 = vector.broadcast %132 : vector<8x1xf32> to vector<8x32xf32>
    %134 = arith.mulf %129, %133 : vector<8x32xf32>
    %135 = vector.broadcast %114 : vector<1x32xf32> to vector<8x32xf32>
    %136 = arith.mulf %134, %135 : vector<8x32xf32>
    %137 = vector.broadcast %116 : vector<1x32xf32> to vector<8x32xf32>
    %138 = arith.addf %136, %137 : vector<8x32xf32>
    %c0_49 = arith.constant 0 : index
    %c0_50 = arith.constant 0 : index
    %c0_51 = arith.constant 0 : index
    %139 = vector.load %arg12[%c0_49, %c0_50, %c0_51] : memref<1x32x64xf32, #tpu.memory_space<vmem>>, vector<1x32x64xf32>
    %140 = vector.shape_cast %139 : vector<1x32x64xf32> to vector<32x64xf32>
    %cst_52 = arith.constant dense<0.000000e+00> : vector<8x64xf32>
    %141 = tpu.matmul %138, %140, %cst_52 {dimension_numbers = #tpu.dot_dimension_numbers<[1], [0], [0], [1], [0, 0, 1, 1], [], []>} : vector<8x32xf32>, vector<32x64xf32>, vector<8x64xf32> -> vector<8x64xf32>
    %c0_53 = arith.constant 0 : index
    %c0_54 = arith.constant 0 : index
    %c0_55 = arith.constant 0 : index
    %142 = vector.load %arg13[%c0_53, %c0_54, %c0_55] : memref<1x1x64xf32, #tpu.memory_space<vmem>>, vector<1x1x64xf32>
    %143 = vector.shape_cast %142 : vector<1x1x64xf32> to vector<1x64xf32>
    %144 = vector.broadcast %143 : vector<1x64xf32> to vector<8x64xf32>
    %145 = arith.addf %141, %144 : vector<8x64xf32>
    %cst_56 = arith.constant 0.000000e+00 : f32
    %146 = vector.broadcast %cst_56 : f32 to vector<8x64xf32>
    %147 = arith.maximumf %145, %146 : vector<8x64xf32>
    %c0_57 = arith.constant 0 : index
    %c0_58 = arith.constant 0 : index
    %c0_59 = arith.constant 0 : index
    %148 = vector.load %arg14[%c0_57, %c0_58, %c0_59] : memref<1x64x32xf32, #tpu.memory_space<vmem>>, vector<1x64x32xf32>
    %149 = vector.shape_cast %148 : vector<1x64x32xf32> to vector<64x32xf32>
    %cst_60 = arith.constant dense<0.000000e+00> : vector<8x32xf32>
    %150 = tpu.matmul %147, %149, %cst_60 {dimension_numbers = #tpu.dot_dimension_numbers<[1], [0], [0], [1], [0, 0, 1, 1], [], []>} : vector<8x64xf32>, vector<64x32xf32>, vector<8x32xf32> -> vector<8x32xf32>
    %c0_61 = arith.constant 0 : index
    %c0_62 = arith.constant 0 : index
    %c0_63 = arith.constant 0 : index
    %151 = vector.load %arg15[%c0_61, %c0_62, %c0_63] : memref<1x1x32xf32, #tpu.memory_space<vmem>>, vector<1x1x32xf32>
    %152 = vector.shape_cast %151 : vector<1x1x32xf32> to vector<1x32xf32>
    %153 = vector.broadcast %152 : vector<1x32xf32> to vector<8x32xf32>
    %154 = arith.addf %150, %153 : vector<8x32xf32>
    %155 = arith.addf %138, %154 : vector<8x32xf32>
    %c0_64 = arith.constant 0 : index
    %c0_65 = arith.constant 0 : index
    %c0_66 = arith.constant 0 : index
    %156 = vector.load %arg16[%c0_64, %c0_65, %c0_66] : memref<1x1x32xf32, #tpu.memory_space<vmem>>, vector<1x1x32xf32>
    %157 = vector.shape_cast %156 : vector<1x1x32xf32> to vector<1x32xf32>
    %c0_67 = arith.constant 0 : index
    %c0_68 = arith.constant 0 : index
    %c0_69 = arith.constant 0 : index
    %158 = vector.load %arg17[%c0_67, %c0_68, %c0_69] : memref<1x1x32xf32, #tpu.memory_space<vmem>>, vector<1x1x32xf32>
    %159 = vector.shape_cast %158 : vector<1x1x32xf32> to vector<1x32xf32>
    %cst_70 = arith.constant dense<0.000000e+00> : vector<8xf32>
    %160 = vector.multi_reduction <add>, %155, %cst_70 [1] : vector<8x32xf32> to vector<8xf32>
    %161 = vector.shape_cast %160 : vector<8xf32> to vector<8x1xf32>
    %cst_71 = arith.constant 3.200000e+01 : f32
    %162 = vector.broadcast %cst_71 : f32 to vector<8x1xf32>
    %163 = arith.divf %161, %162 : vector<8x1xf32>
    %164 = vector.broadcast %163 : vector<8x1xf32> to vector<8x32xf32>
    %165 = arith.subf %155, %164 : vector<8x32xf32>
    %166 = arith.mulf %165, %165 : vector<8x32xf32>
    %cst_72 = arith.constant dense<0.000000e+00> : vector<8xf32>
    %167 = vector.multi_reduction <add>, %166, %cst_72 [1] : vector<8x32xf32> to vector<8xf32>
    %168 = vector.shape_cast %167 : vector<8xf32> to vector<8x1xf32>
    %cst_73 = arith.constant 3.200000e+01 : f32
    %169 = vector.broadcast %cst_73 : f32 to vector<8x1xf32>
    %170 = arith.divf %168, %169 : vector<8x1xf32>
    %171 = vector.broadcast %163 : vector<8x1xf32> to vector<8x32xf32>
    %172 = arith.subf %155, %171 : vector<8x32xf32>
    %cst_74 = arith.constant 9.99999974E-6 : f32
    %173 = vector.broadcast %cst_74 : f32 to vector<8x1xf32>
    %174 = arith.addf %170, %173 : vector<8x1xf32>
    %175 = math.rsqrt %174 : vector<8x1xf32>
    %176 = vector.broadcast %175 : vector<8x1xf32> to vector<8x32xf32>
    %177 = arith.mulf %172, %176 : vector<8x32xf32>
    %178 = vector.broadcast %157 : vector<1x32xf32> to vector<8x32xf32>
    %179 = arith.mulf %177, %178 : vector<8x32xf32>
    %180 = vector.broadcast %159 : vector<1x32xf32> to vector<8x32xf32>
    %181 = arith.addf %179, %180 : vector<8x32xf32>
    %c0_75 = arith.constant 0 : index
    %c0_76 = arith.constant 0 : index
    %182 = vector.load %arg23[%c0_75, %c0_76] : memref<8x32xf32, #tpu.memory_space<vmem>>, vector<8x32xf32>
    tpu.vector_store %arg23[%c0_75, %c0_76], %181 {strides = array<i32>} : memref<8x32xf32, #tpu.memory_space<vmem>>, vector<8x32xf32>,
    %c1_i32 = arith.constant 1 : i32
    %183 = arith.cmpi eq, %arg1, %c1_i32 : i32
    %184 = arith.extui %183 : i1 to i32
    %c0_i32_77 = arith.constant 0 : i32
    %185 = arith.cmpi ne, %184, %c0_i32_77 : i32
    scf.if %185 {
      %186 = vector.shape_cast %181 : vector<8x32xf32> to vector<1x8x32xf32>
      %187 = vector.extract_strided_slice %186 {offsets = [0, 0, 0], sizes = [1, 1, 32], strides = [1, 1, 1]} : vector<1x8x32xf32> to vector<1x1x32xf32>
      %188 = vector.shape_cast %187 : vector<1x1x32xf32> to vector<1x32xf32>
      %c0_78 = arith.constant 0 : index
      %c0_79 = arith.constant 0 : index
      %189 = vector.load %arg18[%c0_78, %c0_79] : memref<32x64xf32, #tpu.memory_space<vmem>>, vector<32x64xf32>
      %cst_80 = arith.constant dense<0.000000e+00> : vector<1x64xf32>
      %190 = tpu.matmul %188, %189, %cst_80 {dimension_numbers = #tpu.dot_dimension_numbers<[1], [0], [0], [1], [0, 0, 1, 1], [], []>} : vector<1x32xf32>, vector<32x64xf32>, vector<1x64xf32> -> vector<1x64xf32>
      %c0_81 = arith.constant 0 : index
      %c0_82 = arith.constant 0 : index
      %191 = vector.load %arg19[%c0_81, %c0_82] : memref<1x64xf32, #tpu.memory_space<vmem>>, vector<1x64xf32>
      %192 = arith.addf %190, %191 : vector<1x64xf32>
      %cst_83 = arith.constant 0.000000e+00 : f32
      %193 = vector.broadcast %cst_83 : f32 to vector<1x64xf32>
      %194 = arith.maximumf %192, %193 : vector<1x64xf32>
      %c0_84 = arith.constant 0 : index
      %c0_85 = arith.constant 0 : index
      %195 = vector.load %arg20[%c0_84, %c0_85] : memref<64x128xf32, #tpu.memory_space<vmem>>, vector<64x128xf32>
      %cst_86 = arith.constant dense<0.000000e+00> : vector<1x128xf32>
      %196 = tpu.matmul %194, %195, %cst_86 {dimension_numbers = #tpu.dot_dimension_numbers<[1], [0], [0], [1], [0, 0, 1, 1], [], []>} : vector<1x64xf32>, vector<64x128xf32>, vector<1x128xf32> -> vector<1x128xf32>
      %c0_87 = arith.constant 0 : index
      %c0_88 = arith.constant 0 : index
      %197 = vector.load %arg21[%c0_87, %c0_88] : memref<1x128xf32, #tpu.memory_space<vmem>>, vector<1x128xf32>
      %198 = arith.addf %196, %197 : vector<1x128xf32>
      %c0_89 = arith.constant 0 : index
      %c0_90 = arith.constant 0 : index
      %c0_91 = arith.constant 0 : index
      %199 = vector.load %arg22[%c0_89, %c0_90, %c0_91] : memref<1x1x128xf32, #tpu.memory_space<vmem>>, vector<1x1x128xf32>
      %200 = vector.shape_cast %199 : vector<1x1x128xf32> to vector<1x128xf32>
      %201 = vector.shape_cast %198 : vector<1x128xf32> to vector<1x1x128xf32>
      tpu.vector_store %arg22[%c0_89, %c0_90, %c0_91], %201 {strides = array<i32>} : memref<1x1x128xf32, #tpu.memory_space<vmem>>, vector<1x1x128xf32>,
    } else {
    }
    return
  }
  func.func @transform_0(%arg0: i32, %arg1: i32) -> (i32, i32) {
    %c0_i32 = arith.constant 0 : i32
    %c0_i32_0 = arith.constant 0 : i32
    return %arg0, %c0_i32 : i32, i32
  }
  func.func @transform_1(%arg0: i32, %arg1: i32) -> (i32, i32, i32) {
    %c0_i32 = arith.constant 0 : i32
    %c0_i32_0 = arith.constant 0 : i32
    %c0_i32_1 = arith.constant 0 : i32
    return %arg0, %c0_i32, %c0_i32_0 : i32, i32, i32
  }
  func.func @transform_2(%arg0: i32, %arg1: i32) -> (i32, i32) {
    %c0_i32 = arith.constant 0 : i32
    %c0_i32_0 = arith.constant 0 : i32
    %c0_i32_1 = arith.constant 0 : i32
    return %c0_i32, %c0_i32_0 : i32, i32
  }
  func.func @transform_3(%arg0: i32, %arg1: i32) -> (i32, i32) {
    %c0_i32 = arith.constant 0 : i32
    %c0_i32_0 = arith.constant 0 : i32
    %c0_i32_1 = arith.constant 0 : i32
    return %c0_i32, %c0_i32_0 : i32, i32
  }
  func.func @transform_4(%arg0: i32, %arg1: i32) -> (i32, i32, i32) {
    %c0_i32 = arith.constant 0 : i32
    %c0_i32_0 = arith.constant 0 : i32
    %c0_i32_1 = arith.constant 0 : i32
    return %arg1, %c0_i32, %c0_i32_0 : i32, i32, i32
  }
  func.func @transform_5(%arg0: i32, %arg1: i32) -> (i32, i32, i32) {
    %c0_i32 = arith.constant 0 : i32
    %c0_i32_0 = arith.constant 0 : i32
    %c0_i32_1 = arith.constant 0 : i32
    return %arg1, %c0_i32, %c0_i32_0 : i32, i32, i32
  }
  func.func @transform_6(%arg0: i32, %arg1: i32) -> (i32, i32, i32) {
    %c0_i32 = arith.constant 0 : i32
    %c0_i32_0 = arith.constant 0 : i32
    %c0_i32_1 = arith.constant 0 : i32
    return %arg1, %c0_i32, %c0_i32_0 : i32, i32, i32
  }
  func.func @transform_7(%arg0: i32, %arg1: i32) -> (i32, i32, i32) {
    %c0_i32 = arith.constant 0 : i32
    %c0_i32_0 = arith.constant 0 : i32
    %c0_i32_1 = arith.constant 0 : i32
    return %arg1, %c0_i32, %c0_i32_0 : i32, i32, i32
  }
  func.func @transform_8(%arg0: i32, %arg1: i32) -> (i32, i32, i32) {
    %c0_i32 = arith.constant 0 : i32
    %c0_i32_0 = arith.constant 0 : i32
    %c0_i32_1 = arith.constant 0 : i32
    return %arg1, %c0_i32, %c0_i32_0 : i32, i32, i32
  }
  func.func @transform_9(%arg0: i32, %arg1: i32) -> (i32, i32, i32) {
    %c0_i32 = arith.constant 0 : i32
    %c0_i32_0 = arith.constant 0 : i32
    %c0_i32_1 = arith.constant 0 : i32
    return %arg1, %c0_i32, %c0_i32_0 : i32, i32, i32
  }
  func.func @transform_10(%arg0: i32, %arg1: i32) -> (i32, i32, i32) {
    %c0_i32 = arith.constant 0 : i32
    %c0_i32_0 = arith.constant 0 : i32
    %c0_i32_1 = arith.constant 0 : i32
    return %arg1, %c0_i32, %c0_i32_0 : i32, i32, i32
  }
  func.func @transform_11(%arg0: i32, %arg1: i32) -> (i32, i32, i32) {
    %c0_i32 = arith.constant 0 : i32
    %c0_i32_0 = arith.constant 0 : i32
    %c0_i32_1 = arith.constant 0 : i32
    return %arg1, %c0_i32, %c0_i32_0 : i32, i32, i32
  }
  func.func @transform_12(%arg0: i32, %arg1: i32) -> (i32, i32, i32) {
    %c0_i32 = arith.constant 0 : i32
    %c0_i32_0 = arith.constant 0 : i32
    %c0_i32_1 = arith.constant 0 : i32
    return %arg1, %c0_i32, %c0_i32_0 : i32, i32, i32
  }
  func.func @transform_13(%arg0: i32, %arg1: i32) -> (i32, i32, i32) {
    %c0_i32 = arith.constant 0 : i32
    %c0_i32_0 = arith.constant 0 : i32
    %c0_i32_1 = arith.constant 0 : i32
    return %arg1, %c0_i32, %c0_i32_0 : i32, i32, i32
  }
  func.func @transform_14(%arg0: i32, %arg1: i32) -> (i32, i32, i32) {
    %c0_i32 = arith.constant 0 : i32
    %c0_i32_0 = arith.constant 0 : i32
    %c0_i32_1 = arith.constant 0 : i32
    return %arg1, %c0_i32, %c0_i32_0 : i32, i32, i32
  }
  func.func @transform_15(%arg0: i32, %arg1: i32) -> (i32, i32, i32) {
    %c0_i32 = arith.constant 0 : i32
    %c0_i32_0 = arith.constant 0 : i32
    %c0_i32_1 = arith.constant 0 : i32
    return %arg1, %c0_i32, %c0_i32_0 : i32, i32, i32
  }
  func.func @transform_16(%arg0: i32, %arg1: i32) -> (i32, i32) {
    %c0_i32 = arith.constant 0 : i32
    %c0_i32_0 = arith.constant 0 : i32
    %c0_i32_1 = arith.constant 0 : i32
    return %c0_i32, %c0_i32_0 : i32, i32
  }
  func.func @transform_17(%arg0: i32, %arg1: i32) -> (i32, i32) {
    %c0_i32 = arith.constant 0 : i32
    %c0_i32_0 = arith.constant 0 : i32
    %c0_i32_1 = arith.constant 0 : i32
    return %c0_i32, %c0_i32_0 : i32, i32
  }
  func.func @transform_18(%arg0: i32, %arg1: i32) -> (i32, i32) {
    %c0_i32 = arith.constant 0 : i32
    %c0_i32_0 = arith.constant 0 : i32
    %c0_i32_1 = arith.constant 0 : i32
    return %c0_i32, %c0_i32_0 : i32, i32
  }
  func.func @transform_19(%arg0: i32, %arg1: i32) -> (i32, i32) {
    %c0_i32 = arith.constant 0 : i32
    %c0_i32_0 = arith.constant 0 : i32
    %c0_i32_1 = arith.constant 0 : i32
    return %c0_i32, %c0_i32_0 : i32, i32
  }
  func.func @transform_20(%arg0: i32, %arg1: i32) -> (i32, i32, i32) {
    %c0_i32 = arith.constant 0 : i32
    %c0_i32_0 = arith.constant 0 : i32
    %c0_i32_1 = arith.constant 0 : i32
    return %arg0, %c0_i32, %c0_i32_0 : i32, i32, i32
  }
}

</mosaic_0001>

<llo_original>
// kernel: crystal_transformer_forward.1
$region0: #{crystal_transformer_forward.1}
  #allocation0 [shape = 'u32[]', space=smem, size = 0x4, offset = 0x4, fixed_abs, tag = 'smem constant byte address 0x4 - core index']
  #allocation1 [shape = 'u32[144,128]{1,0:T(1,128)}', space=vmem, size = 0x12000, scoped, tag = 'internal scratch']
  #allocation2 [shape = 'f32[8,32]{1,0:T(8,128)}', space=vmem, size = 0x1000, scoped, tag = 'scratch operand']
  %s0 = inlined_call_operand.vmem [shape: f32[16,103], index: 0, kind: input, shape index: {}]
  %s1 = inlined_call_operand.vmem [shape: f32[2,1,8], index: 1, kind: input, shape index: {}]
  %s2 = inlined_call_operand.vmem [shape: f32[103,32], index: 2, kind: input, shape index: {}]
  %s3 = inlined_call_operand.hbm [shape: f32[1,32], index: 3, kind: input, shape index: {}]
  %s4 = inlined_call_operand.vmem [shape: f32[2,32,96], index: 4, kind: input, shape index: {}]
  %s5 = inlined_call_operand.vmem [shape: f32[2,1,96], index: 5, kind: input, shape index: {}]
  %s6 = inlined_call_operand.vmem [shape: f32[2,32,32], index: 6, kind: input, shape index: {}]
  %s7 = inlined_call_operand.vmem [shape: f32[2,1,32], index: 7, kind: input, shape index: {}]
  %s8 = inlined_call_operand.vmem [shape: f32[2,1,32], index: 8, kind: input, shape index: {}]
  %s9 = inlined_call_operand.vmem [shape: f32[2,1,32], index: 9, kind: input, shape index: {}]
  %s10 = inlined_call_operand.vmem [shape: f32[2,32,64], index: 10, kind: input, shape index: {}]
  %s11 = inlined_call_operand.hbm [shape: f32[2,1,64], index: 11, kind: input, shape index: {}]
  %s12 = inlined_call_operand.vmem [shape: f32[2,64,32], index: 12, kind: input, shape index: {}]
  %s13 = inlined_call_operand.vmem [shape: f32[2,1,32], index: 13, kind: input, shape index: {}]
  %s14 = inlined_call_operand.vmem [shape: f32[2,1,32], index: 14, kind: input, shape index: {}]
  %s15 = inlined_call_operand.vmem [shape: f32[2,1,32], index: 15, kind: input, shape index: {}]
  %s16 = inlined_call_operand.vmem [shape: f32[32,64], index: 16, kind: input, shape index: {}]
  %s17 = inlined_call_operand.vmem [shape: f32[1,64], index: 17, kind: input, shape index: {}]
  %s18 = inlined_call_operand.vmem [shape: f32[64,128], index: 18, kind: input, shape index: {}]
  %s19 = inlined_call_operand.vmem [shape: f32[1,128], index: 19, kind: input, shape index: {}]
  %s20 = inlined_call_operand.vmem [shape: f32[2,1,128], index: 20, kind: output, shape index: {}]
  %s21 = sld [smem:[#allocation0]]
  $region129: #{crystal_transformer_forward.1} parent=0
    _
  %s23 = ssub.s32 1, %s21
  %s24 = scalar_select 0, %s23, %s21
  $region1: #{crystal_transformer_forward.1} parent=0
    #allocation3 [shape = 'u8[512]{0}', space=vmem, size = 0x400, scoped, tag = 'input window, operand 3, single buffered']
    #allocation4 [shape = 's32[2]{0}', space=sflag, size = 0x8, scoped, tag = 'scoped memory for crystal_transformer_forward.1']
    #allocation5 [shape = 'u8[1024]{0}', space=vmem, size = 0x400, scoped, tag = 'input window, operand 11']
    #allocation6 [shape = 's32[2]{0}', space=sflag, size = 0x8, scoped, tag = 'scoped memory for crystal_transformer_forward.1']
    %25 = vsyncpa [#allocation4], 0
    %26 = vsyncpa [#allocation6], 0
    %s27 = scalar_lea.sflag [#allocation6], 1
    %28 = vsyncpa %s27, 0
    loop: start=0, step=1, limit=6
    $region2: #{crystal_transformer_forward.1} parent=1 // loop_pre_header
      _
    $region3: #{crystal_transformer_forward.1} parent=1 // loop_header
      %s30 = sphi 0, %s34
      %p31 = scmp.ge.s32.totalorder %s30, 6
      %s37 = sphi 0, %s49
      %s38 = sphi 0, %s45
      %s39 = sphi 0, %s37
      %s40 = sphi 0, %s38
      %s41 = sphi 0, %s39
      %s42 = sphi 0, %s40
      %s52 = sphi 0, %s54
      %s55 = sphi 0, %s52
      %s56 = sphi 0, %s55
      %s72 = sphi 0, %s56
      %s78 = sphi 0, %s80
      %s81 = sphi 0, %s78
      %s82 = sphi 0, %s81
      %s98 = sphi 0, %s82
      %s102 = sphi 0, %s102
      %s104 = sphi 0, %s102
      %s105 = sphi 0, %s104
      %s119 = sphi 0, %s105
      %s123 = sphi 0, %s123
      %s125 = sphi 0, %s123
      %s126 = sphi 0, %s125
      %s140 = sphi 0, %s126
      %s146 = sphi 0, %s148
      %s149 = sphi 0, %s146
      %s150 = sphi 0, %s149
      %s166 = sphi 0, %s150
      %s172 = sphi 0, %s174
      %s175 = sphi 0, %s172
      %s176 = sphi 0, %s175
      %s192 = sphi 0, %s176
      %s198 = sphi 0, %s200
      %s201 = sphi 0, %s198
      %s202 = sphi 0, %s201
      %s218 = sphi 0, %s202
      %s224 = sphi 0, %s226
      %s227 = sphi 0, %s224
      %s228 = sphi 0, %s227
      %s244 = sphi 0, %s228
      %s250 = sphi 0, %s252
      %s253 = sphi 0, %s250
      %s254 = sphi 0, %s253
      %s270 = sphi 0, %s254
      %s276 = sphi 0, %s278
      %s279 = sphi 0, %s276
      %s280 = sphi 0, %s279
      %s296 = sphi 0, %s280
      %s302 = sphi 0, %s304
      %s305 = sphi 0, %s302
      %s306 = sphi 0, %s305
      %s322 = sphi 0, %s306
      %s328 = sphi 0, %s330
      %s331 = sphi 0, %s328
      %s332 = sphi 0, %s331
      %s348 = sphi 0, %s332
      %s354 = sphi 0, %s356
      %s357 = sphi 0, %s354
      %s358 = sphi 0, %s357
      %s374 = sphi 0, %s358
      %s380 = sphi 0, %s382
      %s383 = sphi 0, %s380
      %s384 = sphi 0, %s383
      %s400 = sphi 0, %s384
      %s406 = sphi 0, %s408
      %s409 = sphi 0, %s406
      %s410 = sphi 0, %s409
      %s426 = sphi 0, %s410
      %s432 = sphi 0, %s434
      %s435 = sphi 0, %s432
      %s436 = sphi 0, %s435
      %s452 = sphi 0, %s436
      %s456 = sphi 0, %s456
      %s458 = sphi 0, %s456
      %s459 = sphi 0, %s458
      %s473 = sphi 0, %s459
      %s477 = sphi 0, %s477
      %s479 = sphi 0, %s477
      %s480 = sphi 0, %s479
      %s494 = sphi 0, %s480
      %s498 = sphi 0, %s498
      %s500 = sphi 0, %s498
      %s501 = sphi 0, %s500
      %s515 = sphi 0, %s501
      %s519 = sphi 0, %s519
      %s521 = sphi 0, %s519
      %s522 = sphi 0, %s521
      %s536 = sphi 0, %s522
      %s542 = sphi 0, %s544
      %s545 = sphi 0, %s542
      %s546 = sphi 0, %s545
      %s562 = sphi 0, %s546
    $region4: #{crystal_transformer_forward.1} parent=1 // loop_header_branch
      %33 = sbr.rel (%p31) target = $region8
    $region5: #{crystal_transformer_forward.1} parent=1 // loop_body
      %s35 = ssub.s32 %s30, 1
      %s36 = ssub.s32 %s30, 2
      %s43 = sadd.s32 1, %s38
      %p44 = scmp.ge.s32.totalorder %s43, 2
      %s45 = scalar_select %p44, 0, %s43
      %s46 = sadd.s32 1, %s37
      %s47 = scalar_select %p44, %s46, %s37
      %p48 = scmp.ge.s32.totalorder %s47, 2
      %s49 = scalar_select %p48, 0, %s47
      %s50 = ssub.s32 %s37, %s49
      %p51 = scmp.eq.s32.totalorder %s50, 0
      %s53 = sadd.s32 %s52, 1
      %s54 = scalar_select %p51, %s52, %s53
      %p57 = pneg %p51
      %p58 = scmp.eq.s32.totalorder %s30, 3
      %p59 = por %p57, %p58
      %p60 = scmp.ne.s32.totalorder %s52, %s55
      %p61 = scmp.eq.s32.totalorder %s30, 0
      %p62 = por %p60, %p61
      %p63 = scmp.ne.s32.totalorder %s52, %s55
      %p64 = scmp.eq.s32.totalorder %s35, 3
      %p65 = por %p63, %p64
      %p66 = scmp.ne.s32.totalorder %s55, %s56
      %p67 = scmp.eq.s32.totalorder %s35, 0
      %p68 = por %p66, %p67
      %p69 = scmp.ne.s32.totalorder %s55, %s56
      %p70 = scmp.eq.s32.totalorder %s36, 3
      %p71 = por %p69, %p70
      %p73 = scmp.ne.s32.totalorder %s56, %s72
      %p74 = scmp.eq.s32.totalorder %s36, 0
      %p75 = por %p73, %p74
      %s76 = ssub.s32 %s37, %s49
      %p77 = scmp.eq.s32.totalorder %s76, 0
      %s79 = sadd.s32 %s78, 1
      %s80 = scalar_select %p77, %s78, %s79
      %p83 = pneg %p77
      %p84 = scmp.eq.s32.totalorder %s30, 3
      %p85 = por %p83, %p84
      %p86 = scmp.ne.s32.totalorder %s78, %s81
      %p87 = scmp.eq.s32.totalorder %s30, 0
      %p88 = por %p86, %p87
      %p89 = scmp.ne.s32.totalorder %s78, %s81
      %p90 = scmp.eq.s32.totalorder %s35, 3
      %p91 = por %p89, %p90
      %p92 = scmp.ne.s32.totalorder %s81, %s82
      %p93 = scmp.eq.s32.totalorder %s35, 0
      %p94 = por %p92, %p93
      %p95 = scmp.ne.s32.totalorder %s81, %s82
      %p96 = scmp.eq.s32.totalorder %s36, 3
      %p97 = por %p95, %p96
      %p99 = scmp.ne.s32.totalorder %s82, %s98
      %p100 = scmp.eq.s32.totalorder %s36, 0
      %p101 = por %p99, %p100
      %s103 = sadd.s32 %s102, 1
      %p106 = scmp.eq.s32.totalorder %s30, 3
      %p107 = scmp.ne.s32.totalorder %s102, %s104
      %p108 = scmp.eq.s32.totalorder %s30, 0
      %p109 = por %p107, %p108
      %p110 = scmp.ne.s32.totalorder %s102, %s104
      %p111 = scmp.eq.s32.totalorder %s35, 3
      %p112 = por %p110, %p111
      %p113 = scmp.ne.s32.totalorder %s104, %s105
      %p114 = scmp.eq.s32.totalorder %s35, 0
      %p115 = por %p113, %p114
      %p116 = scmp.ne.s32.totalorder %s104, %s105
      %p117 = scmp.eq.s32.totalorder %s36, 3
      %p118 = por %p116, %p117
      %p120 = scmp.ne.s32.totalorder %s105, %s119
      %p121 = scmp.eq.s32.totalorder %s36, 0
      %p122 = por %p120, %p121
      %s124 = sadd.s32 %s123, 1
      %p127 = scmp.eq.s32.totalorder %s30, 3
      %p128 = scmp.ne.s32.totalorder %s123, %s125
      %p129 = scmp.eq.s32.totalorder %s30, 0
      %p130 = por %p128, %p129
      %p131 = scmp.ne.s32.totalorder %s123, %s125
      %p132 = scmp.eq.s32.totalorder %s35, 3
      %p133 = por %p131, %p132
      %p134 = scmp.ne.s32.totalorder %s125, %s126
      %p135 = scmp.eq.s32.totalorder %s35, 0
      %p136 = por %p134, %p135
      %p137 = scmp.ne.s32.totalorder %s125, %s126
      %p138 = scmp.eq.s32.totalorder %s36, 3
      %p139 = por %p137, %p138
      %p141 = scmp.ne.s32.totalorder %s126, %s140
      %p142 = scmp.eq.s32.totalorder %s36, 0
      %p143 = por %p141, %p142
      %s144 = ssub.s32 %s38, %s45
      %p145 = scmp.eq.s32.totalorder %s144, 0
      %s147 = sadd.s32 %s146, 1
      %s148 = scalar_select %p145, %s146, %s147
      %p151 = pneg %p145
      %p152 = scmp.eq.s32.totalorder %s30, 3
      %p153 = por %p151, %p152
      %p154 = scmp.ne.s32.totalorder %s146, %s149
      %p155 = scmp.eq.s32.totalorder %s30, 0
      %p156 = por %p154, %p155
      %p157 = scmp.ne.s32.totalorder %s146, %s149
      %p158 = scmp.eq.s32.totalorder %s35, 3
      %p159 = por %p157, %p158
      %p160 = scmp.ne.s32.totalorder %s149, %s150
      %p161 = scmp.eq.s32.totalorder %s35, 0
      %p162 = por %p160, %p161
      %p163 = scmp.ne.s32.totalorder %s149, %s150
      %p164 = scmp.eq.s32.totalorder %s36, 3
      %p165 = por %p163, %p164
      %p167 = scmp.ne.s32.totalorder %s150, %s166
      %p168 = scmp.eq.s32.totalorder %s36, 0
      %p169 = por %p167, %p168
      %s170 = ssub.s32 %s38, %s45
      %p171 = scmp.eq.s32.totalorder %s170, 0
      %s173 = sadd.s32 %s172, 1
      %s174 = scalar_select %p171, %s172, %s173
      %p177 = pneg %p171
      %p178 = scmp.eq.s32.totalorder %s30, 3
      %p179 = por %p177, %p178
      %p180 = scmp.ne.s32.totalorder %s172, %s175
      %p181 = scmp.eq.s32.totalorder %s30, 0
      %p182 = por %p180, %p181
      %p183 = scmp.ne.s32.totalorder %s172, %s175
      %p184 = scmp.eq.s32.totalorder %s35, 3
      %p185 = por %p183, %p184
      %p186 = scmp.ne.s32.totalorder %s175, %s176
      %p187 = scmp.eq.s32.totalorder %s35, 0
      %p188 = por %p186, %p187
      %p189 = scmp.ne.s32.totalorder %s175, %s176
      %p190 = scmp.eq.s32.totalorder %s36, 3
      %p191 = por %p189, %p190
      %p193 = scmp.ne.s32.totalorder %s176, %s192
      %p194 = scmp.eq.s32.totalorder %s36, 0
      %p195 = por %p193, %p194
      %s196 = ssub.s32 %s38, %s45
      %p197 = scmp.eq.s32.totalorder %s196, 0
      %s199 = sadd.s32 %s198, 1
      %s200 = scalar_select %p197, %s198, %s199
      %p203 = pneg %p197
      %p204 = scmp.eq.s32.totalorder %s30, 3
      %p205 = por %p203, %p204
      %p206 = scmp.ne.s32.totalorder %s198, %s201
      %p207 = scmp.eq.s32.totalorder %s30, 0
      %p208 = por %p206, %p207
      %p209 = scmp.ne.s32.totalorder %s198, %s201
      %p210 = scmp.eq.s32.totalorder %s35, 3
      %p211 = por %p209, %p210
      %p212 = scmp.ne.s32.totalorder %s201, %s202
      %p213 = scmp.eq.s32.totalorder %s35, 0
      %p214 = por %p212, %p213
      %p215 = scmp.ne.s32.totalorder %s201, %s202
      %p216 = scmp.eq.s32.totalorder %s36, 3
      %p217 = por %p215, %p216
      %p219 = scmp.ne.s32.totalorder %s202, %s218
      %p220 = scmp.eq.s32.totalorder %s36, 0
      %p221 = por %p219, %p220
      %s222 = ssub.s32 %s38, %s45
      %p223 = scmp.eq.s32.totalorder %s222, 0
      %s225 = sadd.s32 %s224, 1
      %s226 = scalar_select %p223, %s224, %s225
      %p229 = pneg %p223
      %p230 = scmp.eq.s32.totalorder %s30, 3
      %p231 = por %p229, %p230
      %p232 = scmp.ne.s32.totalorder %s224, %s227
      %p233 = scmp.eq.s32.totalorder %s30, 0
      %p234 = por %p232, %p233
      %p235 = scmp.ne.s32.totalorder %s224, %s227
      %p236 = scmp.eq.s32.totalorder %s35, 3
      %p237 = por %p235, %p236
      %p238 = scmp.ne.s32.totalorder %s227, %s228
      %p239 = scmp.eq.s32.totalorder %s35, 0
      %p240 = por %p238, %p239
      %p241 = scmp.ne.s32.totalorder %s227, %s228
      %p242 = scmp.eq.s32.totalorder %s36, 3
      %p243 = por %p241, %p242
      %p245 = scmp.ne.s32.totalorder %s228, %s244
      %p246 = scmp.eq.s32.totalorder %s36, 0
      %p247 = por %p245, %p246
      %s248 = ssub.s32 %s38, %s45
      %p249 = scmp.eq.s32.totalorder %s248, 0
      %s251 = sadd.s32 %s250, 1
      %s252 = scalar_select %p249, %s250, %s251
      %p255 = pneg %p249
      %p256 = scmp.eq.s32.totalorder %s30, 3
      %p257 = por %p255, %p256
      %p258 = scmp.ne.s32.totalorder %s250, %s253
      %p259 = scmp.eq.s32.totalorder %s30, 0
      %p260 = por %p258, %p259
      %p261 = scmp.ne.s32.totalorder %s250, %s253
      %p262 = scmp.eq.s32.totalorder %s35, 3
      %p263 = por %p261, %p262
      %p264 = scmp.ne.s32.totalorder %s253, %s254
      %p265 = scmp.eq.s32.totalorder %s35, 0
      %p266 = por %p264, %p265
      %p267 = scmp.ne.s32.totalorder %s253, %s254
      %p268 = scmp.eq.s32.totalorder %s36, 3
      %p269 = por %p267, %p268
      %p271 = scmp.ne.s32.totalorder %s254, %s270
      %p272 = scmp.eq.s32.totalorder %s36, 0
      %p273 = por %p271, %p272
      %s274 = ssub.s32 %s38, %s45
      %p275 = scmp.eq.s32.totalorder %s274, 0
      %s277 = sadd.s32 %s276, 1
      %s278 = scalar_select %p275, %s276, %s277
      %p281 = pneg %p275
      %p282 = scmp.eq.s32.totalorder %s30, 3
      %p283 = por %p281, %p282
      %p284 = scmp.ne.s32.totalorder %s276, %s279
      %p285 = scmp.eq.s32.totalorder %s30, 0
      %p286 = por %p284, %p285
      %p287 = scmp.ne.s32.totalorder %s276, %s279
      %p288 = scmp.eq.s32.totalorder %s35, 3
      %p289 = por %p287, %p288
      %p290 = scmp.ne.s32.totalorder %s279, %s280
      %p291 = scmp.eq.s32.totalorder %s35, 0
      %p292 = por %p290, %p291
      %p293 = scmp.ne.s32.totalorder %s279, %s280
      %p294 = scmp.eq.s32.totalorder %s36, 3
      %p295 = por %p293, %p294
      %p297 = scmp.ne.s32.totalorder %s280, %s296
      %p298 = scmp.eq.s32.totalorder %s36, 0
      %p299 = por %p297, %p298
      %s300 = ssub.s32 %s38, %s45
      %p301 = scmp.eq.s32.totalorder %s300, 0
      %s303 = sadd.s32 %s302, 1
      %s304 = scalar_select %p301, %s302, %s303
      %p307 = pneg %p301
      %p308 = scmp.eq.s32.totalorder %s30, 3
      %p309 = por %p307, %p308
      %p310 = scmp.ne.s32.totalorder %s302, %s305
      %p311 = scmp.eq.s32.totalorder %s30, 0
      %p312 = por %p310, %p311
      %p313 = scmp.ne.s32.totalorder %s302, %s305
      %p314 = scmp.eq.s32.totalorder %s35, 3
      %p315 = por %p313, %p314
      %p316 = scmp.ne.s32.totalorder %s305, %s306
      %p317 = scmp.eq.s32.totalorder %s35, 0
      %p318 = por %p316, %p317
      %p319 = scmp.ne.s32.totalorder %s305, %s306
      %p320 = scmp.eq.s32.totalorder %s36, 3
      %p321 = por %p319, %p320
      %p323 = scmp.ne.s32.totalorder %s306, %s322
      %p324 = scmp.eq.s32.totalorder %s36, 0
      %p325 = por %p323, %p324
      %s326 = ssub.s32 %s38, %s45
      %p327 = scmp.eq.s32.totalorder %s326, 0
      %s329 = sadd.s32 %s328, 1
      %s330 = scalar_select %p327, %s328, %s329
      %p333 = pneg %p327
      %p334 = scmp.eq.s32.totalorder %s30, 3
      %p335 = por %p333, %p334
      %p336 = scmp.ne.s32.totalorder %s328, %s331
      %p337 = scmp.eq.s32.totalorder %s30, 0
      %p338 = por %p336, %p337
      %p339 = scmp.ne.s32.totalorder %s328, %s331
      %p340 = scmp.eq.s32.totalorder %s35, 3
      %p341 = por %p339, %p340
      %p342 = scmp.ne.s32.totalorder %s331, %s332
      %p343 = scmp.eq.s32.totalorder %s35, 0
      %p344 = por %p342, %p343
      %p345 = scmp.ne.s32.totalorder %s331, %s332
      %p346 = scmp.eq.s32.totalorder %s36, 3
      %p347 = por %p345, %p346
      %p349 = scmp.ne.s32.totalorder %s332, %s348
      %p350 = scmp.eq.s32.totalorder %s36, 0
      %p351 = por %p349, %p350
      %s352 = ssub.s32 %s38, %s45
      %p353 = scmp.eq.s32.totalorder %s352, 0
      %s355 = sadd.s32 %s354, 1
      %s356 = scalar_select %p353, %s354, %s355
      %p359 = pneg %p353
      %p360 = scmp.eq.s32.totalorder %s30, 3
      %p361 = por %p359, %p360
      %p362 = scmp.ne.s32.totalorder %s354, %s357
      %p363 = scmp.eq.s32.totalorder %s30, 0
      %p364 = por %p362, %p363
      %p365 = scmp.ne.s32.totalorder %s354, %s357
      %p366 = scmp.eq.s32.totalorder %s35, 3
      %p367 = por %p365, %p366
      %p368 = scmp.ne.s32.totalorder %s357, %s358
      %p369 = scmp.eq.s32.totalorder %s35, 0
      %p370 = por %p368, %p369
      %p371 = scmp.ne.s32.totalorder %s357, %s358
      %p372 = scmp.eq.s32.totalorder %s36, 3
      %p373 = por %p371, %p372
      %p375 = scmp.ne.s32.totalorder %s358, %s374
      %p376 = scmp.eq.s32.totalorder %s36, 0
      %p377 = por %p375, %p376
      %s378 = ssub.s32 %s38, %s45
      %p379 = scmp.eq.s32.totalorder %s378, 0
      %s381 = sadd.s32 %s380, 1
      %s382 = scalar_select %p379, %s380, %s381
      %p385 = pneg %p379
      %p386 = scmp.eq.s32.totalorder %s30, 3
      %p387 = por %p385, %p386
      %p388 = scmp.ne.s32.totalorder %s380, %s383
      %p389 = scmp.eq.s32.totalorder %s30, 0
      %p390 = por %p388, %p389
      %p391 = scmp.ne.s32.totalorder %s380, %s383
      %p392 = scmp.eq.s32.totalorder %s35, 3
      %p393 = por %p391, %p392
      %p394 = scmp.ne.s32.totalorder %s383, %s384
      %p395 = scmp.eq.s32.totalorder %s35, 0
      %p396 = por %p394, %p395
      %p397 = scmp.ne.s32.totalorder %s383, %s384
      %p398 = scmp.eq.s32.totalorder %s36, 3
      %p399 = por %p397, %p398
      %p401 = scmp.ne.s32.totalorder %s384, %s400
      %p402 = scmp.eq.s32.totalorder %s36, 0
      %p403 = por %p401, %p402
      %s404 = ssub.s32 %s38, %s45
      %p405 = scmp.eq.s32.totalorder %s404, 0
      %s407 = sadd.s32 %s406, 1
      %s408 = scalar_select %p405, %s406, %s407
      %p411 = pneg %p405
      %p412 = scmp.eq.s32.totalorder %s30, 3
      %p413 = por %p411, %p412
      %p414 = scmp.ne.s32.totalorder %s406, %s409
      %p415 = scmp.eq.s32.totalorder %s30, 0
      %p416 = por %p414, %p415
      %p417 = scmp.ne.s32.totalorder %s406, %s409
      %p418 = scmp.eq.s32.totalorder %s35, 3
      %p419 = por %p417, %p418
      %p420 = scmp.ne.s32.totalorder %s409, %s410
      %p421 = scmp.eq.s32.totalorder %s35, 0
      %p422 = por %p420, %p421
      %p423 = scmp.ne.s32.totalorder %s409, %s410
      %p424 = scmp.eq.s32.totalorder %s36, 3
      %p425 = por %p423, %p424
      %p427 = scmp.ne.s32.totalorder %s410, %s426
      %p428 = scmp.eq.s32.totalorder %s36, 0
      %p429 = por %p427, %p428
      %s430 = ssub.s32 %s38, %s45
      %p431 = scmp.eq.s32.totalorder %s430, 0
      %s433 = sadd.s32 %s432, 1
      %s434 = scalar_select %p431, %s432, %s433
      %p437 = pneg %p431
      %p438 = scmp.eq.s32.totalorder %s30, 3
      %p439 = por %p437, %p438
      %p440 = scmp.ne.s32.totalorder %s432, %s435
      %p441 = scmp.eq.s32.totalorder %s30, 0
      %p442 = por %p440, %p441
      %p443 = scmp.ne.s32.totalorder %s432, %s435
      %p444 = scmp.eq.s32.totalorder %s35, 3
      %p445 = por %p443, %p444
      %p446 = scmp.ne.s32.totalorder %s435, %s436
      %p447 = scmp.eq.s32.totalorder %s35, 0
      %p448 = por %p446, %p447
      %p449 = scmp.ne.s32.totalorder %s435, %s436
      %p450 = scmp.eq.s32.totalorder %s36, 3
      %p451 = por %p449, %p450
      %p453 = scmp.ne.s32.totalorder %s436, %s452
      %p454 = scmp.eq.s32.totalorder %s36, 0
      %p455 = por %p453, %p454
      %s457 = sadd.s32 %s456, 1
      %p460 = scmp.eq.s32.totalorder %s30, 3
      %p461 = scmp.ne.s32.totalorder %s456, %s458
      %p462 = scmp.eq.s32.totalorder %s30, 0
      %p463 = por %p461, %p462
      %p464 = scmp.ne.s32.totalorder %s456, %s458
      %p465 = scmp.eq.s32.totalorder %s35, 3
      %p466 = por %p464, %p465
      %p467 = scmp.ne.s32.totalorder %s458, %s459
      %p468 = scmp.eq.s32.totalorder %s35, 0
      %p469 = por %p467, %p468
      %p470 = scmp.ne.s32.totalorder %s458, %s459
      %p471 = scmp.eq.s32.totalorder %s36, 3
      %p472 = por %p470, %p471
      %p474 = scmp.ne.s32.totalorder %s459, %s473
      %p475 = scmp.eq.s32.totalorder %s36, 0
      %p476 = por %p474, %p475
      %s478 = sadd.s32 %s477, 1
      %p481 = scmp.eq.s32.totalorder %s30, 3
      %p482 = scmp.ne.s32.totalorder %s477, %s479
      %p483 = scmp.eq.s32.totalorder %s30, 0
      %p484 = por %p482, %p483
      %p485 = scmp.ne.s32.totalorder %s477, %s479
      %p486 = scmp.eq.s32.totalorder %s35, 3
      %p487 = por %p485, %p486
      %p488 = scmp.ne.s32.totalorder %s479, %s480
      %p489 = scmp.eq.s32.totalorder %s35, 0
      %p490 = por %p488, %p489
      %p491 = scmp.ne.s32.totalorder %s479, %s480
      %p492 = scmp.eq.s32.totalorder %s36, 3
      %p493 = por %p491, %p492
      %p495 = scmp.ne.s32.totalorder %s480, %s494
      %p496 = scmp.eq.s32.totalorder %s36, 0
      %p497 = por %p495, %p496
      %s499 = sadd.s32 %s498, 1
      %p502 = scmp.eq.s32.totalorder %s30, 3
      %p503 = scmp.ne.s32.totalorder %s498, %s500
      %p504 = scmp.eq.s32.totalorder %s30, 0
      %p505 = por %p503, %p504
      %p506 = scmp.ne.s32.totalorder %s498, %s500
      %p507 = scmp.eq.s32.totalorder %s35, 3
      %p508 = por %p506, %p507
      %p509 = scmp.ne.s32.totalorder %s500, %s501
      %p510 = scmp.eq.s32.totalorder %s35, 0
      %p511 = por %p509, %p510
      %p512 = scmp.ne.s32.totalorder %s500, %s501
      %p513 = scmp.eq.s32.totalorder %s36, 3
      %p514 = por %p512, %p513
      %p516 = scmp.ne.s32.totalorder %s501, %s515
      %p517 = scmp.eq.s32.totalorder %s36, 0
      %p518 = por %p516, %p517
      %s520 = sadd.s32 %s519, 1
      %p523 = scmp.eq.s32.totalorder %s30, 3
      %p524 = scmp.ne.s32.totalorder %s519, %s521
      %p525 = scmp.eq.s32.totalorder %s30, 0
      %p526 = por %p524, %p525
      %p527 = scmp.ne.s32.totalorder %s519, %s521
      %p528 = scmp.eq.s32.totalorder %s35, 3
      %p529 = por %p527, %p528
      %p530 = scmp.ne.s32.totalorder %s521, %s522
      %p531 = scmp.eq.s32.totalorder %s35, 0
      %p532 = por %p530, %p531
      %p533 = scmp.ne.s32.totalorder %s521, %s522
      %p534 = scmp.eq.s32.totalorder %s36, 3
      %p535 = por %p533, %p534
      %p537 = scmp.ne.s32.totalorder %s522, %s536
      %p538 = scmp.eq.s32.totalorder %s36, 0
      %p539 = por %p537, %p538
      %s540 = ssub.s32 %s37, %s49
      %p541 = scmp.eq.s32.totalorder %s540, 0
      %s543 = sadd.s32 %s542, 1
      %s544 = scalar_select %p541, %s542, %s543
      %p547 = pneg %p541
      %p548 = scmp.eq.s32.totalorder %s30, 3
      %p549 = por %p547, %p548
      %p550 = scmp.ne.s32.totalorder %s542, %s545
      %p551 = scmp.eq.s32.totalorder %s30, 0
      %p552 = por %p550, %p551
      %p553 = scmp.ne.s32.totalorder %s542, %s545
      %p554 = scmp.eq.s32.totalorder %s35, 3
      %p555 = por %p553, %p554
      %p556 = scmp.ne.s32.totalorder %s545, %s546
      %p557 = scmp.eq.s32.totalorder %s35, 0
      %p558 = por %p556, %p557
      %p559 = scmp.ne.s32.totalorder %s545, %s546
      %p560 = scmp.eq.s32.totalorder %s36, 3
      %p561 = por %p559, %p560
      %p563 = scmp.ne.s32.totalorder %s546, %s562
      %p564 = scmp.eq.s32.totalorder %s36, 0
      %p565 = por %p563, %p564
      %p566 = scmp.le.s32.totalorder 1, %s30
      %p567 = scmp.lt.s32.totalorder %s30, 5
      %p568 = pnand %p566, %p567
      %p569 = pneg %p568
      // Predicated region
      $region9: #{crystal_transformer_forward.1} parent=5 // pred_check
        _
      $region10: #{crystal_transformer_forward.1} parent=5 // pred_check_branch
        %571 = sbr.rel (%p568) target = $region12
      $region11: #{crystal_transformer_forward.1} parent=5 // pred_region
        %s572 = ssub.s32 %s30, 1
        // Predicated region
        $region13: #{crystal_transformer_forward.1} parent=11 // pred_check
          %p573 = pneg %p115
        $region14: #{crystal_transformer_forward.1} parent=11 // pred_check_branch
          %575 = sbr.rel (%p573) target = $region16
        $region15: #{crystal_transformer_forward.1} parent=11 // pred_region
          _
        $region16: #{crystal_transformer_forward.1} parent=11 // pred_fallthru
          _
        // Predicated region
        $region17: #{crystal_transformer_forward.1} parent=11 // pred_check
          %p576 = pneg %p136
        $region18: #{crystal_transformer_forward.1} parent=11 // pred_check_branch
          %578 = sbr.rel (%p576) target = $region20
        $region19: #{crystal_transformer_forward.1} parent=11 // pred_region
          %s580 = ssub.s32 16, 16
          %581 = vsyncadd [#allocation4], %s580
          %s583 = sshll.u32 [#allocation3], 4
          %s584 = int_to_ptr.vmem [resolvable:$true] %s583
          %586 = dma.hbm_to_vmem [thread:$0]  %s3, 16, %s584, [#allocation4]
        $region20: #{crystal_transformer_forward.1} parent=11 // pred_fallthru
          _
        // Predicated region
        $region21: #{crystal_transformer_forward.1} parent=11 // pred_check
          %p587 = pneg %p469
        $region22: #{crystal_transformer_forward.1} parent=11 // pred_check_branch
          %589 = sbr.rel (%p587) target = $region24
        $region23: #{crystal_transformer_forward.1} parent=11 // pred_region
          _
        $region24: #{crystal_transformer_forward.1} parent=11 // pred_fallthru
          _
        // Predicated region
        $region25: #{crystal_transformer_forward.1} parent=11 // pred_check
          %p590 = pneg %p490
        $region26: #{crystal_transformer_forward.1} parent=11 // pred_check_branch
          %592 = sbr.rel (%p590) target = $region28
        $region27: #{crystal_transformer_forward.1} parent=11 // pred_region
          _
        $region28: #{crystal_transformer_forward.1} parent=11 // pred_fallthru
          _
        // Predicated region
        $region29: #{crystal_transformer_forward.1} parent=11 // pred_check
          %p593 = pneg %p511
        $region30: #{crystal_transformer_forward.1} parent=11 // pred_check_branch
          %595 = sbr.rel (%p593) target = $region32
        $region31: #{crystal_transformer_forward.1} parent=11 // pred_region
          _
        $region32: #{crystal_transformer_forward.1} parent=11 // pred_fallthru
          _
        // Predicated region
        $region33: #{crystal_transformer_forward.1} parent=11 // pred_check
          %p596 = pneg %p532
        $region34: #{crystal_transformer_forward.1} parent=11 // pred_check_branch
          %598 = sbr.rel (%p596) target = $region36
        $region35: #{crystal_transformer_forward.1} parent=11 // pred_region
          _
        $region36: #{crystal_transformer_forward.1} parent=11 // pred_fallthru
          _
      $region12: #{crystal_transformer_forward.1} parent=5 // pred_fallthru
        _
      %p599 = scmp.lt.s32.totalorder %s30, 4
      // Predicated region
      $region37: #{crystal_transformer_forward.1} parent=5 // pred_check
        %p600 = pneg %p599
      $region38: #{crystal_transformer_forward.1} parent=5 // pred_check_branch
        %602 = sbr.rel (%p600) target = $region40
      $region39: #{crystal_transformer_forward.1} parent=5 // pred_region
        // Predicated region
        $region41: #{crystal_transformer_forward.1} parent=39 // pred_check
          %p603 = pneg %p62
        $region42: #{crystal_transformer_forward.1} parent=39 // pred_check_branch
          %605 = sbr.rel (%p603) target = $region44
        $region43: #{crystal_transformer_forward.1} parent=39 // pred_region
          %p606 = scmp.lt.s32.totalorder %s37, 1
          %s607 = scalar_select %p606, %s37, 1
          %s608 = smul.addr %s607, 8
          %s609 = scalar_lea.vmem %s0, %s608
        $region44: #{crystal_transformer_forward.1} parent=39 // pred_fallthru
          _
        // Predicated region
        $region45: #{crystal_transformer_forward.1} parent=39 // pred_check
          %p610 = pneg %p88
        $region46: #{crystal_transformer_forward.1} parent=39 // pred_check_branch
          %612 = sbr.rel (%p610) target = $region48
        $region47: #{crystal_transformer_forward.1} parent=39 // pred_region
          %p613 = scmp.lt.s32.totalorder %s37, 1
          %s614 = scalar_select %p613, %s37, 1
          %s615 = scalar_lea.vmem %s1, %s614
        $region48: #{crystal_transformer_forward.1} parent=39 // pred_fallthru
          _
        // Predicated region
        $region49: #{crystal_transformer_forward.1} parent=39 // pred_check
          %p616 = pneg %p156
        $region50: #{crystal_transformer_forward.1} parent=39 // pred_check_branch
          %618 = sbr.rel (%p616) target = $region52
        $region51: #{crystal_transformer_forward.1} parent=39 // pred_region
          %p619 = scmp.lt.s32.totalorder %s38, 1
          %s620 = scalar_select %p619, %s38, 1
          %s621 = smul.addr %s620, 4
          %s622 = smul.addr %s621, 8
          %s623 = scalar_lea.vmem %s4, %s622
        $region52: #{crystal_transformer_forward.1} parent=39 // pred_fallthru
          _
        // Predicated region
        $region53: #{crystal_transformer_forward.1} parent=39 // pred_check
          %p624 = pneg %p182
        $region54: #{crystal_transformer_forward.1} parent=39 // pred_check_branch
          %626 = sbr.rel (%p624) target = $region56
        $region55: #{crystal_transformer_forward.1} parent=39 // pred_region
          %p627 = scmp.lt.s32.totalorder %s38, 1
          %s628 = scalar_select %p627, %s38, 1
          %s629 = scalar_lea.vmem %s5, %s628
        $region56: #{crystal_transformer_forward.1} parent=39 // pred_fallthru
          _
        // Predicated region
        $region57: #{crystal_transformer_forward.1} parent=39 // pred_check
          %p630 = pneg %p208
        $region58: #{crystal_transformer_forward.1} parent=39 // pred_check_branch
          %632 = sbr.rel (%p630) target = $region60
        $region59: #{crystal_transformer_forward.1} parent=39 // pred_region
          %p633 = scmp.lt.s32.totalorder %s38, 1
          %s634 = scalar_select %p633, %s38, 1
          %s635 = smul.addr %s634, 4
          %s636 = smul.addr %s635, 8
          %s637 = scalar_lea.vmem %s6, %s636
        $region60: #{crystal_transformer_forward.1} parent=39 // pred_fallthru
          _
        // Predicated region
        $region61: #{crystal_transformer_forward.1} parent=39 // pred_check
          %p638 = pneg %p234
        $region62: #{crystal_transformer_forward.1} parent=39 // pred_check_branch
          %640 = sbr.rel (%p638) target = $region64
        $region63: #{crystal_transformer_forward.1} parent=39 // pred_region
          %p641 = scmp.lt.s32.totalorder %s38, 1
          %s642 = scalar_select %p641, %s38, 1
          %s643 = scalar_lea.vmem %s7, %s642
        $region64: #{crystal_transformer_forward.1} parent=39 // pred_fallthru
          _
        // Predicated region
        $region65: #{crystal_transformer_forward.1} parent=39 // pred_check
          %p644 = pneg %p260
        $region66: #{crystal_transformer_forward.1} parent=39 // pred_check_branch
          %646 = sbr.rel (%p644) target = $region68
        $region67: #{crystal_transformer_forward.1} parent=39 // pred_region
          %p647 = scmp.lt.s32.totalorder %s38, 1
          %s648 = scalar_select %p647, %s38, 1
          %s649 = scalar_lea.vmem %s8, %s648
        $region68: #{crystal_transformer_forward.1} parent=39 // pred_fallthru
          _
        // Predicated region
        $region69: #{crystal_transformer_forward.1} parent=39 // pred_check
          %p650 = pneg %p286
        $region70: #{crystal_transformer_forward.1} parent=39 // pred_check_branch
          %652 = sbr.rel (%p650) target = $region72
        $region71: #{crystal_transformer_forward.1} parent=39 // pred_region
          %p653 = scmp.lt.s32.totalorder %s38, 1
          %s654 = scalar_select %p653, %s38, 1
          %s655 = scalar_lea.vmem %s9, %s654
        $region72: #{crystal_transformer_forward.1} parent=39 // pred_fallthru
          _
        // Predicated region
        $region73: #{crystal_transformer_forward.1} parent=39 // pred_check
          %p656 = pneg %p312
        $region74: #{crystal_transformer_forward.1} parent=39 // pred_check_branch
          %658 = sbr.rel (%p656) target = $region76
        $region75: #{crystal_transformer_forward.1} parent=39 // pred_region
          %p659 = scmp.lt.s32.totalorder %s38, 1
          %s660 = scalar_select %p659, %s38, 1
          %s661 = smul.addr %s660, 4
          %s662 = smul.addr %s661, 8
          %s663 = scalar_lea.vmem %s10, %s662
        $region76: #{crystal_transformer_forward.1} parent=39 // pred_fallthru
          _
        // Predicated region
        $region77: #{crystal_transformer_forward.1} parent=39 // pred_check
          %p664 = pneg %p338
        $region78: #{crystal_transformer_forward.1} parent=39 // pred_check_branch
          %666 = sbr.rel (%p664) target = $region80
        $region79: #{crystal_transformer_forward.1} parent=39 // pred_region
          %s667 = sand.u32 %s328, 1
          %s668 = scalar_lea.sflag [#allocation6], %s667
          %s669 = sand.u32 %s328, 1
          %s670 = scalar_lea.vmem [#allocation5], %s669
          %s672 = ssub.s32 16, 16
          %673 = vsyncadd %s668, %s672
          %s674 = smul.addr %s38, 16
          %s675 = scalar_lea.hbm %s11, %s674
          %s677 = sshll.u32 %s670, 4
          %s678 = int_to_ptr.vmem [resolvable:$true] %s677
          %680 = dma.hbm_to_vmem [thread:$0]  %s675, 16, %s678, %s668
        $region80: #{crystal_transformer_forward.1} parent=39 // pred_fallthru
          _
        // Predicated region
        $region81: #{crystal_transformer_forward.1} parent=39 // pred_check
          %p681 = pneg %p364
        $region82: #{crystal_transformer_forward.1} parent=39 // pred_check_branch
          %683 = sbr.rel (%p681) target = $region84
        $region83: #{crystal_transformer_forward.1} parent=39 // pred_region
          %p684 = scmp.lt.s32.totalorder %s38, 1
          %s685 = scalar_select %p684, %s38, 1
          %s686 = smul.addr %s685, 8
          %s687 = smul.addr %s686, 8
          %s688 = scalar_lea.vmem %s12, %s687
        $region84: #{crystal_transformer_forward.1} parent=39 // pred_fallthru
          _
        // Predicated region
        $region85: #{crystal_transformer_forward.1} parent=39 // pred_check
          %p689 = pneg %p390
        $region86: #{crystal_transformer_forward.1} parent=39 // pred_check_branch
          %691 = sbr.rel (%p689) target = $region88
        $region87: #{crystal_transformer_forward.1} parent=39 // pred_region
          %p692 = scmp.lt.s32.totalorder %s38, 1
          %s693 = scalar_select %p692, %s38, 1
          %s694 = scalar_lea.vmem %s13, %s693
        $region88: #{crystal_transformer_forward.1} parent=39 // pred_fallthru
          _
        // Predicated region
        $region89: #{crystal_transformer_forward.1} parent=39 // pred_check
          %p695 = pneg %p416
        $region90: #{crystal_transformer_forward.1} parent=39 // pred_check_branch
          %697 = sbr.rel (%p695) target = $region92
        $region91: #{crystal_transformer_forward.1} parent=39 // pred_region
          %p698 = scmp.lt.s32.totalorder %s38, 1
          %s699 = scalar_select %p698, %s38, 1
          %s700 = scalar_lea.vmem %s14, %s699
        $region92: #{crystal_transformer_forward.1} parent=39 // pred_fallthru
          _
        // Predicated region
        $region93: #{crystal_transformer_forward.1} parent=39 // pred_check
          %p701 = pneg %p442
        $region94: #{crystal_transformer_forward.1} parent=39 // pred_check_branch
          %703 = sbr.rel (%p701) target = $region96
        $region95: #{crystal_transformer_forward.1} parent=39 // pred_region
          %p704 = scmp.lt.s32.totalorder %s38, 1
          %s705 = scalar_select %p704, %s38, 1
          %s706 = scalar_lea.vmem %s15, %s705
        $region96: #{crystal_transformer_forward.1} parent=39 // pred_fallthru
          _
      $region40: #{crystal_transformer_forward.1} parent=5 // pred_fallthru
        _
      %p707 = scmp.le.s32.totalorder 1, %s30
      %p708 = scmp.lt.s32.totalorder %s30, 5
      %p709 = pnand %p707, %p708
      %p710 = pneg %p709
      // Predicated region
      $region97: #{crystal_transformer_forward.1} parent=5 // pred_check
        _
      $region98: #{crystal_transformer_forward.1} parent=5 // pred_check_branch
        %712 = sbr.rel (%p709) target = $region100
      $region99: #{crystal_transformer_forward.1} parent=5 // pred_region
        %s713 = ssub.s32 %s30, 1
        // Predicated region
        $region101: #{crystal_transformer_forward.1} parent=99 // pred_check
          %p714 = pneg %p136
        $region102: #{crystal_transformer_forward.1} parent=99 // pred_check_branch
          %716 = sbr.rel (%p714) target = $region104
        $region103: #{crystal_transformer_forward.1} parent=99 // pred_region
          %717 = dma.done [#allocation4], 16
        $region104: #{crystal_transformer_forward.1} parent=99 // pred_fallthru
          _
        %s718 = sand.u32 %s331, 1
        %s719 = scalar_lea.sflag [#allocation6], %s718
        %s720 = sand.u32 %s331, 1
        %s721 = scalar_lea.vmem [#allocation5], %s720
        // Predicated region
        $region105: #{crystal_transformer_forward.1} parent=99 // pred_check
          %p722 = pneg %p344
        $region106: #{crystal_transformer_forward.1} parent=99 // pred_check_branch
          %724 = sbr.rel (%p722) target = $region108
        $region107: #{crystal_transformer_forward.1} parent=99 // pred_region
          %725 = dma.done %s719, 16
        $region108: #{crystal_transformer_forward.1} parent=99 // pred_fallthru
          _
        %p726 = scmp.lt.s32.totalorder %s39, 1
        %s727 = scalar_select %p726, %s39, 1
        %s728 = smul.addr %s727, 8
        %s729 = scalar_lea.vmem %s0, %s728
        %p730 = pneg %p68
        %p731 = pneg %p65
        %p732 = scmp.lt.s32.totalorder %s39, 1
        %s733 = scalar_select %p732, %s39, 1
        %s734 = scalar_lea.vmem %s1, %s733
        %p735 = pneg %p94
        %p736 = pneg %p91
        %p737 = pneg %p115
        %p738 = pneg %p112
        %p739 = pneg %p136
        %p740 = pneg %p133
        %p741 = scmp.lt.s32.totalorder %s40, 1
        %s742 = scalar_select %p741, %s40, 1
        %s743 = smul.addr %s742, 4
        %s744 = smul.addr %s743, 8
        %s745 = scalar_lea.vmem %s4, %s744
        %p746 = pneg %p162
        %p747 = pneg %p159
        %p748 = scmp.lt.s32.totalorder %s40, 1
        %s749 = scalar_select %p748, %s40, 1
        %s750 = scalar_lea.vmem %s5, %s749
        %p751 = pneg %p188
        %p752 = pneg %p185
        %p753 = scmp.lt.s32.totalorder %s40, 1
        %s754 = scalar_select %p753, %s40, 1
        %s755 = smul.addr %s754, 4
        %s756 = smul.addr %s755, 8
        %s757 = scalar_lea.vmem %s6, %s756
        %p758 = pneg %p214
        %p759 = pneg %p211
        %p760 = scmp.lt.s32.totalorder %s40, 1
        %s761 = scalar_select %p760, %s40, 1
        %s762 = scalar_lea.vmem %s7, %s761
        %p763 = pneg %p240
        %p764 = pneg %p237
        %p765 = scmp.lt.s32.totalorder %s40, 1
        %s766 = scalar_select %p765, %s40, 1
        %s767 = scalar_lea.vmem %s8, %s766
        %p768 = pneg %p266
        %p769 = pneg %p263
        %p770 = scmp.lt.s32.totalorder %s40, 1
        %s771 = scalar_select %p770, %s40, 1
        %s772 = scalar_lea.vmem %s9, %s771
        %p773 = pneg %p292
        %p774 = pneg %p289
        %p775 = scmp.lt.s32.totalorder %s40, 1
        %s776 = scalar_select %p775, %s40, 1
        %s777 = smul.addr %s776, 4
        %s778 = smul.addr %s777, 8
        %s779 = scalar_lea.vmem %s10, %s778
        %p780 = pneg %p318
        %p781 = pneg %p315
        %s782 = sand.u32 %s331, 1
        %s783 = scalar_lea.sflag [#allocation6], %s782
        %s784 = sand.u32 %s331, 1
        %s785 = scalar_lea.vmem [#allocation5], %s784
        %p786 = pneg %p344
        %p787 = pneg %p341
        %p788 = scmp.lt.s32.totalorder %s40, 1
        %s789 = scalar_select %p788, %s40, 1
        %s790 = smul.addr %s789, 8
        %s791 = smul.addr %s790, 8
        %s792 = scalar_lea.vmem %s12, %s791
        %p793 = pneg %p370
        %p794 = pneg %p367
        %p795 = scmp.lt.s32.totalorder %s40, 1
        %s796 = scalar_select %p795, %s40, 1
        %s797 = scalar_lea.vmem %s13, %s796
        %p798 = pneg %p396
        %p799 = pneg %p393
        %p800 = scmp.lt.s32.totalorder %s40, 1
        %s801 = scalar_select %p800, %s40, 1
        %s802 = scalar_lea.vmem %s14, %s801
        %p803 = pneg %p422
        %p804 = pneg %p419
        %p805 = scmp.lt.s32.totalorder %s40, 1
        %s806 = scalar_select %p805, %s40, 1
        %s807 = scalar_lea.vmem %s15, %s806
        %p808 = pneg %p448
        %p809 = pneg %p445
        %p810 = pneg %p469
        %p811 = pneg %p466
        %p812 = pneg %p490
        %p813 = pneg %p487
        %p814 = pneg %p511
        %p815 = pneg %p508
        %p816 = pneg %p532
        %p817 = pneg %p529
        %p818 = pneg %p558
        %p819 = pneg %p555
        %p820 = scmp.lt.s32.totalorder %s39, 1
        %s821 = scalar_select %p820, %s39, 1
        %s822 = scalar_lea.vmem %s20, %s821
        %p823 = scmp.lt.s32.totalorder %s39, 1
        %s824 = scalar_select %p823, %s39, 1
        %s825 = smul.addr %s824, 8
        %s826 = scalar_lea.vmem %s0, %s825
        %p827 = scmp.lt.s32.totalorder %s39, 1
        %s828 = scalar_select %p827, %s39, 1
        %s829 = scalar_lea.vmem %s1, %s828
        %p830 = scmp.lt.s32.totalorder %s40, 1
        %s831 = scalar_select %p830, %s40, 1
        %s832 = smul.addr %s831, 4
        %s833 = smul.addr %s832, 8
        %s834 = scalar_lea.vmem %s4, %s833
        %p835 = scmp.lt.s32.totalorder %s40, 1
        %s836 = scalar_select %p835, %s40, 1
        %s837 = scalar_lea.vmem %s5, %s836
        %p838 = scmp.lt.s32.totalorder %s40, 1
        %s839 = scalar_select %p838, %s40, 1
        %s840 = smul.addr %s839, 4
        %s841 = smul.addr %s840, 8
        %s842 = scalar_lea.vmem %s6, %s841
        %p843 = scmp.lt.s32.totalorder %s40, 1
        %s844 = scalar_select %p843, %s40, 1
        %s845 = scalar_lea.vmem %s7, %s844
        %p846 = scmp.lt.s32.totalorder %s40, 1
        %s847 = scalar_select %p846, %s40, 1
        %s848 = scalar_lea.vmem %s8, %s847
        %p849 = scmp.lt.s32.totalorder %s40, 1
        %s850 = scalar_select %p849, %s40, 1
        %s851 = scalar_lea.vmem %s9, %s850
        %p852 = scmp.lt.s32.totalorder %s40, 1
        %s853 = scalar_select %p852, %s40, 1
        %s854 = smul.addr %s853, 4
        %s855 = smul.addr %s854, 8
        %s856 = scalar_lea.vmem %s10, %s855
        %p857 = scmp.lt.s32.totalorder %s40, 1
        %s858 = scalar_select %p857, %s40, 1
        %s859 = smul.addr %s858, 8
        %s860 = smul.addr %s859, 8
        %s861 = scalar_lea.vmem %s12, %s860
        %p862 = scmp.lt.s32.totalorder %s40, 1
        %s863 = scalar_select %p862, %s40, 1
        %s864 = scalar_lea.vmem %s13, %s863
        %p865 = scmp.lt.s32.totalorder %s40, 1
        %s866 = scalar_select %p865, %s40, 1
        %s867 = scalar_lea.vmem %s14, %s866
        %p868 = scmp.lt.s32.totalorder %s40, 1
        %s869 = scalar_select %p868, %s40, 1
        %s870 = scalar_lea.vmem %s15, %s869
        %p871 = scmp.lt.s32.totalorder %s39, 1
        %s872 = scalar_select %p871, %s39, 1
        %s873 = scalar_lea.vmem %s20, %s872
        %p874 = scmp.eq.s32.totalorder %s40, 0
        // Predicated region
        $region109: #{crystal_transformer_forward.1} parent=99 // pred_check
          %p875 = pneg %p874
        $region110: #{crystal_transformer_forward.1} parent=99 // pred_check_branch
          %877 = sbr.rel (%p875) target = $region112
        $region111: #{crystal_transformer_forward.1} parent=99 // pred_region
          %v878 = vld [vmem:[%s826] sm:$0xff]
          %v879 = vld [vmem:[%s2] sm:$0xff]
          %v880 = vld [vmem:[%s2 + $0x8] sm:$0xff]
          %v881 = vld [vmem:[%s2 + $0x10] sm:$0xff]
          %v882 = vld [vmem:[%s2 + $0x18] sm:$0xff]
          %v883 = vld [vmem:[%s2 + $0x20] sm:$0xff]
          %v884 = vld [vmem:[%s2 + $0x28] sm:$0xff]
          %v885 = vld [vmem:[%s2 + $0x30] sm:$0xff]
          %v886 = vld [vmem:[%s2 + $0x38] sm:$0xff]
          %v887 = vld [vmem:[%s2 + $0x40] sm:$0xff]
          %v888 = vld [vmem:[%s2 + $0x48] sm:$0xff]
          %v889 = vld [vmem:[%s2 + $0x50] sm:$0xff]
          %v890 = vld [vmem:[%s2 + $0x58] sm:$0xff]
          %v891 = vld [vmem:[%s2 + $0x60] sm:$0x7f]
          %v892 = vld [vmem:[#allocation3] sm:$0x1]
          %v894 = vlaneseq
          %v895 = vshrl.u32 %v894, 7
          %v896 = vsub.s32 0, %v895
          %v897 = vrot.slane %v892, %v896
          %vm899 = vcmask 842752
          %v901 = vsel %vm899, %v878, 0
          %vm903 = vcmask 1046528
          %v905 = vsel %vm903, %v891, 0
          %907 = vmatprep.subr.mxu0 0.0
          %908 = vmatpush1.msra.mxu0 %v879
          %909 = vmatprep.subr.mxu0 0.0
          %910 = vmatpush1.msra.mxu0 %v880
          %911 = vmatprep.subr.mxu0 0.0
          %912 = vmatpush1.msra.mxu0 %v881
          %913 = vmatprep.subr.mxu0 0.0
          %914 = vmatpush1.msra.mxu0 %v882
          %915 = vmatprep.subr.mxu0 0.0
          %916 = vmatpush1.msra.mxu0 %v883
          %917 = vmatprep.subr.mxu0 0.0
          %918 = vmatpush1.msra.mxu0 %v884
          %919 = vmatprep.subr.mxu0 0.0
          %920 = vmatpush1.msra.mxu0 %v885
          %921 = vmatprep.subr.mxu0 0.0
          %922 = vmatpush1.msra.mxu0 %v886
          %923 = vmatprep.subr.mxu0 0.0
          %924 = vmatpush1.msra.mxu0 %v887
          %925 = vmatprep.subr.mxu0 0.0
          %926 = vmatpush1.msra.mxu0 %v888
          %927 = vmatprep.subr.mxu0 0.0
          %928 = vmatpush1.msra.mxu0 %v889
          %929 = vmatprep.subr.mxu0 0.0
          %930 = vmatpush1.msra.mxu0 %v890
          %931 = vmatprep.subr.mxu0 0.0
          %932 = vmatpush1.msra.mxu0 %v905
          %933 = vmatprep.subr.mxu0 0.0
          %934 = vmatpush1.msra.mxu0 0.0
          %935 = vmatprep.subr.mxu0 0.0
          %936 = vmatpush1.msra.mxu0 0.0
          %937 = vmatprep.subr.mxu0 0.0
          %938 = vmatpush1.msra.mxu0 0.0
          %939 = vmatprep.subr.mxu0 0.0
          %940 = vmatpush1.msra.mxu0 0.0
          %941 = vmatprep.subr.mxu0 0.0
          %942 = vmatpush1.msra.mxu0 0.0
          %943 = vmatprep.subr.mxu0 0.0
          %944 = vmatpush1.msra.mxu0 0.0
          %945 = vmatprep.subr.mxu0 0.0
          %946 = vmatpush1.msra.mxu0 0.0
          %947 = vmatprep.subr.mxu0 0.0
          %948 = vmatpush1.msra.mxu0 0.0
          %949 = vmatprep.subr.mxu0 0.0
          %950 = vmatpush1.msra.mxu0 0.0
          %951 = vmatprep.subr.mxu0 0.0
          %952 = vmatpush1.msra.mxu0 0.0
          %953 = vmatprep.subr.mxu0 0.0
          %954 = vmatpush1.msra.mxu0 0.0
          %955 = vmatprep.subr.mxu0 0.0
          %956 = vmatpush1.msra.mxu0 0.0
          %957 = vmatprep.subr.mxu0 0.0
          %958 = vmatpush1.msra.mxu0 0.0
          %959 = vmatprep.subr.mxu0 0.0
          %960 = vmatpush1.msra.mxu0 0.0
          %961 = vmatprep.subr.mxu0 0.0
          %962 = vmatpush1.msra.mxu0 0.0
          %963 = vmatprep.subr.mxu0 0.0
          %964 = vmatpush1.msra.mxu0 0.0
          %965 = vmatprep.subr.mxu0 0.0
          %966 = vmatpush1.msra.mxu0 0.0
          %967 = vmatprep.subr.mxu0 0.0
          %968 = vmatpush1.msra.mxu0 0.0
          %969 = vmatprep.subr.mxu0 0.0
          %970 = vmatpush1.msra.mxu0 0.0
          %971 = vmatprep.mubr.f32.mxu0 0.0
          %972 = vmatmul.mubr.f32.gmra.mrb[0].mxu0 %v901
          %v973 = vpop.f32.mrb[0].mxu0
          %v974 = vadd.f32 %v897, %v973
          %v975 = vpop.f32.mrb[0].mxu0
          %976 = vdwg.mxu0
          %vm977 = vcmask 261120
          %978 = vst.msk [vmem:[#allocation2] sm:$0xff] %vm977, %v974
        $region112: #{crystal_transformer_forward.1} parent=99 // pred_fallthru
          _
        %v979 = vld [vmem:[#allocation2] sm:$0xff]
        %v980 = vld [vmem:[%s834] sm:$0xff]
        %v981 = vld [vmem:[%s834 + $0x8] sm:$0xff]
        %v982 = vld [vmem:[%s834 + $0x10] sm:$0xff]
        %v983 = vld [vmem:[%s834 + $0x18] sm:$0xff]
        %v984 = vld [vmem:[%s837] sm:$0x1]
        %v986 = vlaneseq
        %v987 = vshrl.u32 %v986, 7
        %v988 = vsub.s32 0, %v987
        %v989 = vrot.slane %v984, %v988
        %vm991 = vcmask 261120
        %v993 = vsel %vm991, %v979, 0
        %995 = vmatprep.subr.mxu0 0.0
        %996 = vmatpush1.msra.mxu0 %v980
        %997 = vmatprep.subr.mxu0 0.0
        %998 = vmatpush1.msra.mxu0 %v981
        %999 = vmatprep.subr.mxu0 0.0
        %1000 = vmatpush1.msra.mxu0 %v982
        %1001 = vmatprep.subr.mxu0 0.0
        %1002 = vmatpush1.msra.mxu0 %v983
        %1003 = vmatprep.subr.mxu0 0.0
        %1004 = vmatpush1.msra.mxu0 0.0
        %1005 = vmatprep.subr.mxu0 0.0
        %1006 = vmatpush1.msra.mxu0 0.0
        %1007 = vmatprep.subr.mxu0 0.0
        %1008 = vmatpush1.msra.mxu0 0.0
        %1009 = vmatprep.subr.mxu0 0.0
        %1010 = vmatpush1.msra.mxu0 0.0
        %1011 = vmatprep.subr.mxu0 0.0
        %1012 = vmatpush1.msra.mxu0 0.0
        %1013 = vmatprep.subr.mxu0 0.0
        %1014 = vmatpush1.msra.mxu0 0.0
        %1015 = vmatprep.subr.mxu0 0.0
        %1016 = vmatpush1.msra.mxu0 0.0
        %1017 = vmatprep.subr.mxu0 0.0
        %1018 = vmatpush1.msra.mxu0 0.0
        %1019 = vmatprep.subr.mxu0 0.0
        %1020 = vmatpush1.msra.mxu0 0.0
        %1021 = vmatprep.subr.mxu0 0.0
        %1022 = vmatpush1.msra.mxu0 0.0
        %1023 = vmatprep.subr.mxu0 0.0
        %1024 = vmatpush1.msra.mxu0 0.0
        %1025 = vmatprep.subr.mxu0 0.0
        %1026 = vmatpush1.msra.mxu0 0.0
        %1027 = vmatprep.subr.mxu0 0.0
        %1028 = vmatpush1.msra.mxu0 0.0
        %1029 = vmatprep.subr.mxu0 0.0
        %1030 = vmatpush1.msra.mxu0 0.0
        %1031 = vmatprep.subr.mxu0 0.0
        %1032 = vmatpush1.msra.mxu0 0.0
        %1033 = vmatprep.subr.mxu0 0.0
        %1034 = vmatpush1.msra.mxu0 0.0
        %1035 = vmatprep.subr.mxu0 0.0
        %1036 = vmatpush1.msra.mxu0 0.0
        %1037 = vmatprep.subr.mxu0 0.0
        %1038 = vmatpush1.msra.mxu0 0.0
        %1039 = vmatprep.subr.mxu0 0.0
        %1040 = vmatpush1.msra.mxu0 0.0
        %1041 = vmatprep.subr.mxu0 0.0
        %1042 = vmatpush1.msra.mxu0 0.0
        %1043 = vmatprep.subr.mxu0 0.0
        %1044 = vmatpush1.msra.mxu0 0.0
        %1045 = vmatprep.subr.mxu0 0.0
        %1046 = vmatpush1.msra.mxu0 0.0
        %1047 = vmatprep.subr.mxu0 0.0
        %1048 = vmatpush1.msra.mxu0 0.0
        %1049 = vmatprep.subr.mxu0 0.0
        %1050 = vmatpush1.msra.mxu0 0.0
        %1051 = vmatprep.subr.mxu0 0.0
        %1052 = vmatpush1.msra.mxu0 0.0
        %1053 = vmatprep.subr.mxu0 0.0
        %1054 = vmatpush1.msra.mxu0 0.0
        %1055 = vmatprep.subr.mxu0 0.0
        %1056 = vmatpush1.msra.mxu0 0.0
        %1057 = vmatprep.subr.mxu0 0.0
        %1058 = vmatpush1.msra.mxu0 0.0
        %1059 = vmatprep.mubr.f32.mxu0 0.0
        %1060 = vmatmul.mubr.f32.gmra.mrb[0].mxu0 %v993
        %v1061 = vpop.f32.mrb[0].mxu0
        %v1062 = vadd.f32 %v989, %v1061
        %v1063 = vpop.f32.mrb[0].mxu0
        %1064 = vdwg.mxu0
        %v1065 = vld [vmem:[%s829] sm:$0x1]
        %1067 = vrot.lane.b32.xlu0 %v1062, 96
        %v1068 = vpop.permute.xlu0 %1067
        %vm1069 = vcmask 64512
        %v1070 = vsel %vm1069, %v1062, 0
        %v1072 = vsel %vm1069, %v1068, 0
        %1074 = vmatprep.subr.mxu0 0.0
        %1075 = vmatpush1.xpose.msra.mxu0 %v1072
        %1076 = vmatprep.subr.mxu0 0.0
        %1077 = vmatpush1.xpose.msra.mxu0 0.0
        %1078 = vmatprep.subr.mxu0 0.0
        %1079 = vmatpush1.xpose.msra.mxu0 0.0
        %1080 = vmatprep.subr.mxu0 0.0
        %1081 = vmatpush1.xpose.msra.mxu0 0.0
        %1082 = vmatprep.subr.mxu0 0.0
        %1083 = vmatpush1.xpose.msra.mxu0 0.0
        %1084 = vmatprep.subr.mxu0 0.0
        %1085 = vmatpush1.xpose.msra.mxu0 0.0
        %1086 = vmatprep.subr.mxu0 0.0
        %1087 = vmatpush1.xpose.msra.mxu0 0.0
        %1088 = vmatprep.subr.mxu0 0.0
        %1089 = vmatpush1.xpose.msra.mxu0 0.0
        %1090 = vmatprep.subr.mxu0 0.0
        %1091 = vmatpush1.xpose.msra.mxu0 0.0
        %1092 = vmatprep.subr.mxu0 0.0
        %1093 = vmatpush1.xpose.msra.mxu0 0.0
        %1094 = vmatprep.subr.mxu0 0.0
        %1095 = vmatpush1.xpose.msra.mxu0 0.0
        %1096 = vmatprep.subr.mxu0 0.0
        %1097 = vmatpush1.xpose.msra.mxu0 0.0
        %1098 = vmatprep.subr.mxu0 0.0
        %1099 = vmatpush1.xpose.msra.mxu0 0.0
        %1100 = vmatprep.subr.mxu0 0.0
        %1101 = vmatpush1.xpose.msra.mxu0 0.0
        %1102 = vmatprep.subr.mxu0 0.0
        %1103 = vmatpush1.xpose.msra.mxu0 0.0
        %1104 = vmatprep.subr.mxu0 0.0
        %1105 = vmatpush1.xpose.msra.mxu0 0.0
        %1106 = vmatprep.subr.mxu0 0.0
        %1107 = vmatpush1.xpose.msra.mxu0 0.0
        %1108 = vmatprep.subr.mxu0 0.0
        %1109 = vmatpush1.xpose.msra.mxu0 0.0
        %1110 = vmatprep.subr.mxu0 0.0
        %1111 = vmatpush1.xpose.msra.mxu0 0.0
        %1112 = vmatprep.subr.mxu0 0.0
        %1113 = vmatpush1.xpose.msra.mxu0 0.0
        %1114 = vmatprep.subr.mxu0 0.0
        %1115 = vmatpush1.xpose.msra.mxu0 0.0
        %1116 = vmatprep.subr.mxu0 0.0
        %1117 = vmatpush1.xpose.msra.mxu0 0.0
        %1118 = vmatprep.subr.mxu0 0.0
        %1119 = vmatpush1.xpose.msra.mxu0 0.0
        %1120 = vmatprep.subr.mxu0 0.0
        %1121 = vmatpush1.xpose.msra.mxu0 0.0
        %1122 = vmatprep.subr.mxu0 0.0
        %1123 = vmatpush1.xpose.msra.mxu0 0.0
        %1124 = vmatprep.subr.mxu0 0.0
        %1125 = vmatpush1.xpose.msra.mxu0 0.0
        %1126 = vmatprep.subr.mxu0 0.0
        %1127 = vmatpush1.xpose.msra.mxu0 0.0
        %1128 = vmatprep.subr.mxu0 0.0
        %1129 = vmatpush1.xpose.msra.mxu0 0.0
        %1130 = vmatprep.subr.mxu0 0.0
        %1131 = vmatpush1.xpose.msra.mxu0 0.0
        %1132 = vmatprep.subr.mxu0 0.0
        %1133 = vmatpush1.xpose.msra.mxu0 0.0
        %1134 = vmatprep.subr.mxu0 0.0
        %1135 = vmatpush1.xpose.msra.mxu0 0.0
        %1136 = vmatprep.subr.mxu0 0.0
        %1137 = vmatpush1.xpose.msra.mxu0 0.0
        %1138 = vmatprep.mubr.f32.mxu0 0.0
        %1139 = vmatmul.mubr.f32.gmra.mrb[0].mxu0 %v1070
        %v1140 = vpop.f32.mrb[0].mxu0
        %v1141 = vadd.f32 0.0, %v1140
        %v1142 = vpop.f32.mrb[0].mxu0
        %1143 = vdwg.mxu0
        %v1144 = vmul.f32 %v1141, 0.35355338
        %v1146 = vlaneseq
        %v1147 = vshrl.u32 %v1146, 7
        %v1148 = vsub.s32 0, %v1147
        %v1149 = vrot.slane %v1065, %v1148
        %v1151 = vadd.f32 %v1144, %v1149
        %v1152 = vsel %vm1069, %v1151, -inf
        %1153 = vmax.xlane.f32.xlu0 %v1152
        %v1154 = vpop.xlane.xlu0 %1153
        %v1155 = vsub.f32 %v1151, %v1154
        %v1156 = vmul.f32 %v1155, 1.442695
        %v1157 = vpow.pop %v1156
        %v1158 = vsel %vm1069, %v1157, 0.0
        %1159 = vadd.xlane.f32.xlu0 %v1158
        %v1160 = vpop.xlane.xlu0 %1159
        %v1161 = vrcp.pop %v1160
        %v1162 = vmul.f32 %v1157, %v1161
        %1163 = vrot.lane.b32.xlu0 %v1062, 64
        %v1164 = vpop.permute.xlu0 %1163
        %v1167 = vsel %vm1069, %v1162, 0
        %1169 = vmatprep.subr.mxu0 0.0
        %1170 = vmatpush1.msra.mxu0 %v1164
        %1171 = vmatprep.subr.mxu0 0.0
        %1172 = vmatpush1.msra.mxu0 0.0
        %1173 = vmatprep.subr.mxu0 0.0
        %1174 = vmatpush1.msra.mxu0 0.0
        %1175 = vmatprep.subr.mxu0 0.0
        %1176 = vmatpush1.msra.mxu0 0.0
        %1177 = vmatprep.subr.mxu0 0.0
        %1178 = vmatpush1.msra.mxu0 0.0
        %1179 = vmatprep.subr.mxu0 0.0
        %1180 = vmatpush1.msra.mxu0 0.0
        %1181 = vmatprep.subr.mxu0 0.0
        %1182 = vmatpush1.msra.mxu0 0.0
        %1183 = vmatprep.subr.mxu0 0.0
        %1184 = vmatpush1.msra.mxu0 0.0
        %1185 = vmatprep.subr.mxu0 0.0
        %1186 = vmatpush1.msra.mxu0 0.0
        %1187 = vmatprep.subr.mxu0 0.0
        %1188 = vmatpush1.msra.mxu0 0.0
        %1189 = vmatprep.subr.mxu0 0.0
        %1190 = vmatpush1.msra.mxu0 0.0
        %1191 = vmatprep.subr.mxu0 0.0
        %1192 = vmatpush1.msra.mxu0 0.0
        %1193 = vmatprep.subr.mxu0 0.0
        %1194 = vmatpush1.msra.mxu0 0.0
        %1195 = vmatprep.subr.mxu0 0.0
        %1196 = vmatpush1.msra.mxu0 0.0
        %1197 = vmatprep.subr.mxu0 0.0
        %1198 = vmatpush1.msra.mxu0 0.0
        %1199 = vmatprep.subr.mxu0 0.0
        %1200 = vmatpush1.msra.mxu0 0.0
        %1201 = vmatprep.subr.mxu0 0.0
        %1202 = vmatpush1.msra.mxu0 0.0
        %1203 = vmatprep.subr.mxu0 0.0
        %1204 = vmatpush1.msra.mxu0 0.0
        %1205 = vmatprep.subr.mxu0 0.0
        %1206 = vmatpush1.msra.mxu0 0.0
        %1207 = vmatprep.subr.mxu0 0.0
        %1208 = vmatpush1.msra.mxu0 0.0
        %1209 = vmatprep.subr.mxu0 0.0
        %1210 = vmatpush1.msra.mxu0 0.0
        %1211 = vmatprep.subr.mxu0 0.0
        %1212 = vmatpush1.msra.mxu0 0.0
        %1213 = vmatprep.subr.mxu0 0.0
        %1214 = vmatpush1.msra.mxu0 0.0
        %1215 = vmatprep.subr.mxu0 0.0
        %1216 = vmatpush1.msra.mxu0 0.0
        %1217 = vmatprep.subr.mxu0 0.0
        %1218 = vmatpush1.msra.mxu0 0.0
        %1219 = vmatprep.subr.mxu0 0.0
        %1220 = vmatpush1.msra.mxu0 0.0
        %1221 = vmatprep.subr.mxu0 0.0
        %1222 = vmatpush1.msra.mxu0 0.0
        %1223 = vmatprep.subr.mxu0 0.0
        %1224 = vmatpush1.msra.mxu0 0.0
        %1225 = vmatprep.subr.mxu0 0.0
        %1226 = vmatpush1.msra.mxu0 0.0
        %1227 = vmatprep.subr.mxu0 0.0
        %1228 = vmatpush1.msra.mxu0 0.0
        %1229 = vmatprep.subr.mxu0 0.0
        %1230 = vmatpush1.msra.mxu0 0.0
        %1231 = vmatprep.subr.mxu0 0.0
        %1232 = vmatpush1.msra.mxu0 0.0
        %1233 = vmatprep.mubr.f32.mxu0 0.0
        %1234 = vmatmul.mubr.f32.gmra.mrb[0].mxu0 %v1167
        %v1235 = vpop.f32.mrb[0].mxu0
        %v1236 = vadd.f32 0.0, %v1235
        %v1237 = vpop.f32.mrb[0].mxu0
        %1238 = vdwg.mxu0
        %1239 = vrot.lane.b32.xlu0 %v1062, 120
        %v1240 = vpop.permute.xlu0 %1239
        %1241 = vrot.lane.b32.xlu0 %v1062, 88
        %v1242 = vpop.permute.xlu0 %1241
        %v1243 = vsel %vm1069, %v1240, 0
        %v1245 = vsel %vm1069, %v1242, 0
        %1247 = vmatprep.subr.mxu0 0.0
        %1248 = vmatpush1.xpose.msra.mxu0 %v1245
        %1249 = vmatprep.subr.mxu0 0.0
        %1250 = vmatpush1.xpose.msra.mxu0 0.0
        %1251 = vmatprep.subr.mxu0 0.0
        %1252 = vmatpush1.xpose.msra.mxu0 0.0
        %1253 = vmatprep.subr.mxu0 0.0
        %1254 = vmatpush1.xpose.msra.mxu0 0.0
        %1255 = vmatprep.subr.mxu0 0.0
        %1256 = vmatpush1.xpose.msra.mxu0 0.0
        %1257 = vmatprep.subr.mxu0 0.0
        %1258 = vmatpush1.xpose.msra.mxu0 0.0
        %1259 = vmatprep.subr.mxu0 0.0
        %1260 = vmatpush1.xpose.msra.mxu0 0.0
        %1261 = vmatprep.subr.mxu0 0.0
        %1262 = vmatpush1.xpose.msra.mxu0 0.0
        %1263 = vmatprep.subr.mxu0 0.0
        %1264 = vmatpush1.xpose.msra.mxu0 0.0
        %1265 = vmatprep.subr.mxu0 0.0
        %1266 = vmatpush1.xpose.msra.mxu0 0.0
        %1267 = vmatprep.subr.mxu0 0.0
        %1268 = vmatpush1.xpose.msra.mxu0 0.0
        %1269 = vmatprep.subr.mxu0 0.0
        %1270 = vmatpush1.xpose.msra.mxu0 0.0
        %1271 = vmatprep.subr.mxu0 0.0
        %1272 = vmatpush1.xpose.msra.mxu0 0.0
        %1273 = vmatprep.subr.mxu0 0.0
        %1274 = vmatpush1.xpose.msra.mxu0 0.0
        %1275 = vmatprep.subr.mxu0 0.0
        %1276 = vmatpush1.xpose.msra.mxu0 0.0
        %1277 = vmatprep.subr.mxu0 0.0
        %1278 = vmatpush1.xpose.msra.mxu0 0.0
        %1279 = vmatprep.subr.mxu0 0.0
        %1280 = vmatpush1.xpose.msra.mxu0 0.0
        %1281 = vmatprep.subr.mxu0 0.0
        %1282 = vmatpush1.xpose.msra.mxu0 0.0
        %1283 = vmatprep.subr.mxu0 0.0
        %1284 = vmatpush1.xpose.msra.mxu0 0.0
        %1285 = vmatprep.subr.mxu0 0.0
        %1286 = vmatpush1.xpose.msra.mxu0 0.0
        %1287 = vmatprep.subr.mxu0 0.0
        %1288 = vmatpush1.xpose.msra.mxu0 0.0
        %1289 = vmatprep.subr.mxu0 0.0
        %1290 = vmatpush1.xpose.msra.mxu0 0.0
        %1291 = vmatprep.subr.mxu0 0.0
        %1292 = vmatpush1.xpose.msra.mxu0 0.0
        %1293 = vmatprep.subr.mxu0 0.0
        %1294 = vmatpush1.xpose.msra.mxu0 0.0
        %1295 = vmatprep.subr.mxu0 0.0
        %1296 = vmatpush1.xpose.msra.mxu0 0.0
        %1297 = vmatprep.subr.mxu0 0.0
        %1298 = vmatpush1.xpose.msra.mxu0 0.0
        %1299 = vmatprep.subr.mxu0 0.0
        %1300 = vmatpush1.xpose.msra.mxu0 0.0
        %1301 = vmatprep.subr.mxu0 0.0
        %1302 = vmatpush1.xpose.msra.mxu0 0.0
        %1303 = vmatprep.subr.mxu0 0.0
        %1304 = vmatpush1.xpose.msra.mxu0 0.0
        %1305 = vmatprep.subr.mxu0 0.0
        %1306 = vmatpush1.xpose.msra.mxu0 0.0
        %1307 = vmatprep.subr.mxu0 0.0
        %1308 = vmatpush1.xpose.msra.mxu0 0.0
        %1309 = vmatprep.subr.mxu0 0.0
        %1310 = vmatpush1.xpose.msra.mxu0 0.0
        %1311 = vmatprep.mubr.f32.mxu0 0.0
        %1312 = vmatmul.mubr.f32.gmra.mrb[0].mxu0 %v1243
        %v1313 = vpop.f32.mrb[0].mxu0
        %v1314 = vadd.f32 0.0, %v1313
        %v1315 = vpop.f32.mrb[0].mxu0
        %1316 = vdwg.mxu0
        %v1317 = vmul.f32 %v1314, 0.35355338
        %v1318 = vadd.f32 %v1317, %v1149
        %v1319 = vsel %vm1069, %v1318, -inf
        %1320 = vmax.xlane.f32.xlu0 %v1319
        %v1321 = vpop.xlane.xlu0 %1320
        %v1322 = vsub.f32 %v1318, %v1321
        %v1323 = vmul.f32 %v1322, 1.442695
        %v1324 = vpow.pop %v1323
        %v1325 = vsel %vm1069, %v1324, 0.0
        %1326 = vadd.xlane.f32.xlu0 %v1325
        %v1327 = vpop.xlane.xlu0 %1326
        %v1328 = vrcp.pop %v1327
        %v1329 = vmul.f32 %v1324, %v1328
        %1330 = vrot.lane.b32.xlu0 %v1062, 56
        %v1331 = vpop.permute.xlu0 %1330
        %v1334 = vsel %vm1069, %v1329, 0
        %1336 = vmatprep.subr.mxu0 0.0
        %1337 = vmatpush1.msra.mxu0 %v1331
        %1338 = vmatprep.subr.mxu0 0.0
        %1339 = vmatpush1.msra.mxu0 0.0
        %1340 = vmatprep.subr.mxu0 0.0
        %1341 = vmatpush1.msra.mxu0 0.0
        %1342 = vmatprep.subr.mxu0 0.0
        %1343 = vmatpush1.msra.mxu0 0.0
        %1344 = vmatprep.subr.mxu0 0.0
        %1345 = vmatpush1.msra.mxu0 0.0
        %1346 = vmatprep.subr.mxu0 0.0
        %1347 = vmatpush1.msra.mxu0 0.0
        %1348 = vmatprep.subr.mxu0 0.0
        %1349 = vmatpush1.msra.mxu0 0.0
        %1350 = vmatprep.subr.mxu0 0.0
        %1351 = vmatpush1.msra.mxu0 0.0
        %1352 = vmatprep.subr.mxu0 0.0
        %1353 = vmatpush1.msra.mxu0 0.0
        %1354 = vmatprep.subr.mxu0 0.0
        %1355 = vmatpush1.msra.mxu0 0.0
        %1356 = vmatprep.subr.mxu0 0.0
        %1357 = vmatpush1.msra.mxu0 0.0
        %1358 = vmatprep.subr.mxu0 0.0
        %1359 = vmatpush1.msra.mxu0 0.0
        %1360 = vmatprep.subr.mxu0 0.0
        %1361 = vmatpush1.msra.mxu0 0.0
        %1362 = vmatprep.subr.mxu0 0.0
        %1363 = vmatpush1.msra.mxu0 0.0
        %1364 = vmatprep.subr.mxu0 0.0
        %1365 = vmatpush1.msra.mxu0 0.0
        %1366 = vmatprep.subr.mxu0 0.0
        %1367 = vmatpush1.msra.mxu0 0.0
        %1368 = vmatprep.subr.mxu0 0.0
        %1369 = vmatpush1.msra.mxu0 0.0
        %1370 = vmatprep.subr.mxu0 0.0
        %1371 = vmatpush1.msra.mxu0 0.0
        %1372 = vmatprep.subr.mxu0 0.0
        %1373 = vmatpush1.msra.mxu0 0.0
        %1374 = vmatprep.subr.mxu0 0.0
        %1375 = vmatpush1.msra.mxu0 0.0
        %1376 = vmatprep.subr.mxu0 0.0
        %1377 = vmatpush1.msra.mxu0 0.0
        %1378 = vmatprep.subr.mxu0 0.0
        %1379 = vmatpush1.msra.mxu0 0.0
        %1380 = vmatprep.subr.mxu0 0.0
        %1381 = vmatpush1.msra.mxu0 0.0
        %1382 = vmatprep.subr.mxu0 0.0
        %1383 = vmatpush1.msra.mxu0 0.0
        %1384 = vmatprep.subr.mxu0 0.0
        %1385 = vmatpush1.msra.mxu0 0.0
        %1386 = vmatprep.subr.mxu0 0.0
        %1387 = vmatpush1.msra.mxu0 0.0
        %1388 = vmatprep.subr.mxu0 0.0
        %1389 = vmatpush1.msra.mxu0 0.0
        %1390 = vmatprep.subr.mxu0 0.0
        %1391 = vmatpush1.msra.mxu0 0.0
        %1392 = vmatprep.subr.mxu0 0.0
        %1393 = vmatpush1.msra.mxu0 0.0
        %1394 = vmatprep.subr.mxu0 0.0
        %1395 = vmatpush1.msra.mxu0 0.0
        %1396 = vmatprep.subr.mxu0 0.0
        %1397 = vmatpush1.msra.mxu0 0.0
        %1398 = vmatprep.subr.mxu0 0.0
        %1399 = vmatpush1.msra.mxu0 0.0
        %1400 = vmatprep.mubr.f32.mxu0 0.0
        %1401 = vmatmul.mubr.f32.gmra.mrb[0].mxu0 %v1334
        %v1402 = vpop.f32.mrb[0].mxu0
        %v1403 = vadd.f32 0.0, %v1402
        %v1404 = vpop.f32.mrb[0].mxu0
        %1405 = vdwg.mxu0
        %1406 = vrot.lane.b32.xlu0 %v1062, 112
        %v1407 = vpop.permute.xlu0 %1406
        %1408 = vrot.lane.b32.xlu0 %v1062, 80
        %v1409 = vpop.permute.xlu0 %1408
        %v1410 = vsel %vm1069, %v1407, 0
        %v1412 = vsel %vm1069, %v1409, 0
        %1414 = vmatprep.subr.mxu0 0.0
        %1415 = vmatpush1.xpose.msra.mxu0 %v1412
        %1416 = vmatprep.subr.mxu0 0.0
        %1417 = vmatpush1.xpose.msra.mxu0 0.0
        %1418 = vmatprep.subr.mxu0 0.0
        %1419 = vmatpush1.xpose.msra.mxu0 0.0
        %1420 = vmatprep.subr.mxu0 0.0
        %1421 = vmatpush1.xpose.msra.mxu0 0.0
        %1422 = vmatprep.subr.mxu0 0.0
        %1423 = vmatpush1.xpose.msra.mxu0 0.0
        %1424 = vmatprep.subr.mxu0 0.0
        %1425 = vmatpush1.xpose.msra.mxu0 0.0
        %1426 = vmatprep.subr.mxu0 0.0
        %1427 = vmatpush1.xpose.msra.mxu0 0.0
        %1428 = vmatprep.subr.mxu0 0.0
        %1429 = vmatpush1.xpose.msra.mxu0 0.0
        %1430 = vmatprep.subr.mxu0 0.0
        %1431 = vmatpush1.xpose.msra.mxu0 0.0
        %1432 = vmatprep.subr.mxu0 0.0
        %1433 = vmatpush1.xpose.msra.mxu0 0.0
        %1434 = vmatprep.subr.mxu0 0.0
        %1435 = vmatpush1.xpose.msra.mxu0 0.0
        %1436 = vmatprep.subr.mxu0 0.0
        %1437 = vmatpush1.xpose.msra.mxu0 0.0
        %1438 = vmatprep.subr.mxu0 0.0
        %1439 = vmatpush1.xpose.msra.mxu0 0.0
        %1440 = vmatprep.subr.mxu0 0.0
        %1441 = vmatpush1.xpose.msra.mxu0 0.0
        %1442 = vmatprep.subr.mxu0 0.0
        %1443 = vmatpush1.xpose.msra.mxu0 0.0
        %1444 = vmatprep.subr.mxu0 0.0
        %1445 = vmatpush1.xpose.msra.mxu0 0.0
        %1446 = vmatprep.subr.mxu0 0.0
        %1447 = vmatpush1.xpose.msra.mxu0 0.0
        %1448 = vmatprep.subr.mxu0 0.0
        %1449 = vmatpush1.xpose.msra.mxu0 0.0
        %1450 = vmatprep.subr.mxu0 0.0
        %1451 = vmatpush1.xpose.msra.mxu0 0.0
        %1452 = vmatprep.subr.mxu0 0.0
        %1453 = vmatpush1.xpose.msra.mxu0 0.0
        %1454 = vmatprep.subr.mxu0 0.0
        %1455 = vmatpush1.xpose.msra.mxu0 0.0
        %1456 = vmatprep.subr.mxu0 0.0
        %1457 = vmatpush1.xpose.msra.mxu0 0.0
        %1458 = vmatprep.subr.mxu0 0.0
        %1459 = vmatpush1.xpose.msra.mxu0 0.0
        %1460 = vmatprep.subr.mxu0 0.0
        %1461 = vmatpush1.xpose.msra.mxu0 0.0
        %1462 = vmatprep.subr.mxu0 0.0
        %1463 = vmatpush1.xpose.msra.mxu0 0.0
        %1464 = vmatprep.subr.mxu0 0.0
        %1465 = vmatpush1.xpose.msra.mxu0 0.0
        %1466 = vmatprep.subr.mxu0 0.0
        %1467 = vmatpush1.xpose.msra.mxu0 0.0
        %1468 = vmatprep.subr.mxu0 0.0
        %1469 = vmatpush1.xpose.msra.mxu0 0.0
        %1470 = vmatprep.subr.mxu0 0.0
        %1471 = vmatpush1.xpose.msra.mxu0 0.0
        %1472 = vmatprep.subr.mxu0 0.0
        %1473 = vmatpush1.xpose.msra.mxu0 0.0
        %1474 = vmatprep.subr.mxu0 0.0
        %1475 = vmatpush1.xpose.msra.mxu0 0.0
        %1476 = vmatprep.subr.mxu0 0.0
        %1477 = vmatpush1.xpose.msra.mxu0 0.0
        %1478 = vmatprep.mubr.f32.mxu0 0.0
        %1479 = vmatmul.mubr.f32.gmra.mrb[0].mxu0 %v1410
        %v1480 = vpop.f32.mrb[0].mxu0
        %v1481 = vadd.f32 0.0, %v1480
        %v1482 = vpop.f32.mrb[0].mxu0
        %1483 = vdwg.mxu0
        %v1484 = vmul.f32 %v1481, 0.35355338
        %v1485 = vadd.f32 %v1484, %v1149
        %v1486 = vsel %vm1069, %v1485, -inf
        %1487 = vmax.xlane.f32.xlu0 %v1486
        %v1488 = vpop.xlane.xlu0 %1487
        %v1489 = vsub.f32 %v1485, %v1488
        %v1490 = vmul.f32 %v1489, 1.442695
        %v1491 = vpow.pop %v1490
        %v1492 = vsel %vm1069, %v1491, 0.0
        %1493 = vadd.xlane.f32.xlu0 %v1492
        %v1494 = vpop.xlane.xlu0 %1493
        %v1495 = vrcp.pop %v1494
        %v1496 = vmul.f32 %v1491, %v1495
        %1497 = vrot.lane.b32.xlu0 %v1062, 48
        %v1498 = vpop.permute.xlu0 %1497
        %v1501 = vsel %vm1069, %v1496, 0
        %1503 = vmatprep.subr.mxu0 0.0
        %1504 = vmatpush1.msra.mxu0 %v1498
        %1505 = vmatprep.subr.mxu0 0.0
        %1506 = vmatpush1.msra.mxu0 0.0
        %1507 = vmatprep.subr.mxu0 0.0
        %1508 = vmatpush1.msra.mxu0 0.0
        %1509 = vmatprep.subr.mxu0 0.0
        %1510 = vmatpush1.msra.mxu0 0.0
        %1511 = vmatprep.subr.mxu0 0.0
        %1512 = vmatpush1.msra.mxu0 0.0
        %1513 = vmatprep.subr.mxu0 0.0
        %1514 = vmatpush1.msra.mxu0 0.0
        %1515 = vmatprep.subr.mxu0 0.0
        %1516 = vmatpush1.msra.mxu0 0.0
        %1517 = vmatprep.subr.mxu0 0.0
        %1518 = vmatpush1.msra.mxu0 0.0
        %1519 = vmatprep.subr.mxu0 0.0
        %1520 = vmatpush1.msra.mxu0 0.0
        %1521 = vmatprep.subr.mxu0 0.0
        %1522 = vmatpush1.msra.mxu0 0.0
        %1523 = vmatprep.subr.mxu0 0.0
        %1524 = vmatpush1.msra.mxu0 0.0
        %1525 = vmatprep.subr.mxu0 0.0
        %1526 = vmatpush1.msra.mxu0 0.0
        %1527 = vmatprep.subr.mxu0 0.0
        %1528 = vmatpush1.msra.mxu0 0.0
        %1529 = vmatprep.subr.mxu0 0.0
        %1530 = vmatpush1.msra.mxu0 0.0
        %1531 = vmatprep.subr.mxu0 0.0
        %1532 = vmatpush1.msra.mxu0 0.0
        %1533 = vmatprep.subr.mxu0 0.0
        %1534 = vmatpush1.msra.mxu0 0.0
        %1535 = vmatprep.subr.mxu0 0.0
        %1536 = vmatpush1.msra.mxu0 0.0
        %1537 = vmatprep.subr.mxu0 0.0
        %1538 = vmatpush1.msra.mxu0 0.0
        %1539 = vmatprep.subr.mxu0 0.0
        %1540 = vmatpush1.msra.mxu0 0.0
        %1541 = vmatprep.subr.mxu0 0.0
        %1542 = vmatpush1.msra.mxu0 0.0
        %1543 = vmatprep.subr.mxu0 0.0
        %1544 = vmatpush1.msra.mxu0 0.0
        %1545 = vmatprep.subr.mxu0 0.0
        %1546 = vmatpush1.msra.mxu0 0.0
        %1547 = vmatprep.subr.mxu0 0.0
        %1548 = vmatpush1.msra.mxu0 0.0
        %1549 = vmatprep.subr.mxu0 0.0
        %1550 = vmatpush1.msra.mxu0 0.0
        %1551 = vmatprep.subr.mxu0 0.0
        %1552 = vmatpush1.msra.mxu0 0.0
        %1553 = vmatprep.subr.mxu0 0.0
        %1554 = vmatpush1.msra.mxu0 0.0
        %1555 = vmatprep.subr.mxu0 0.0
        %1556 = vmatpush1.msra.mxu0 0.0
        %1557 = vmatprep.subr.mxu0 0.0
        %1558 = vmatpush1.msra.mxu0 0.0
        %1559 = vmatprep.subr.mxu0 0.0
        %1560 = vmatpush1.msra.mxu0 0.0
        %1561 = vmatprep.subr.mxu0 0.0
        %1562 = vmatpush1.msra.mxu0 0.0
        %1563 = vmatprep.subr.mxu0 0.0
        %1564 = vmatpush1.msra.mxu0 0.0
        %1565 = vmatprep.subr.mxu0 0.0
        %1566 = vmatpush1.msra.mxu0 0.0
        %1567 = vmatprep.mubr.f32.mxu0 0.0
        %1568 = vmatmul.mubr.f32.gmra.mrb[0].mxu0 %v1501
        %v1569 = vpop.f32.mrb[0].mxu0
        %v1570 = vadd.f32 0.0, %v1569
        %v1571 = vpop.f32.mrb[0].mxu0
        %1572 = vdwg.mxu0
        %1573 = vrot.lane.b32.xlu0 %v1062, 104
        %v1574 = vpop.permute.xlu0 %1573
        %1575 = vrot.lane.b32.xlu0 %v1062, 72
        %v1576 = vpop.permute.xlu0 %1575
        %v1577 = vsel %vm1069, %v1574, 0
        %v1579 = vsel %vm1069, %v1576, 0
        %1581 = vmatprep.subr.mxu0 0.0
        %1582 = vmatpush1.xpose.msra.mxu0 %v1579
        %1583 = vmatprep.subr.mxu0 0.0
        %1584 = vmatpush1.xpose.msra.mxu0 0.0
        %1585 = vmatprep.subr.mxu0 0.0
        %1586 = vmatpush1.xpose.msra.mxu0 0.0
        %1587 = vmatprep.subr.mxu0 0.0
        %1588 = vmatpush1.xpose.msra.mxu0 0.0
        %1589 = vmatprep.subr.mxu0 0.0
        %1590 = vmatpush1.xpose.msra.mxu0 0.0
        %1591 = vmatprep.subr.mxu0 0.0
        %1592 = vmatpush1.xpose.msra.mxu0 0.0
        %1593 = vmatprep.subr.mxu0 0.0
        %1594 = vmatpush1.xpose.msra.mxu0 0.0
        %1595 = vmatprep.subr.mxu0 0.0
        %1596 = vmatpush1.xpose.msra.mxu0 0.0
        %1597 = vmatprep.subr.mxu0 0.0
        %1598 = vmatpush1.xpose.msra.mxu0 0.0
        %1599 = vmatprep.subr.mxu0 0.0
        %1600 = vmatpush1.xpose.msra.mxu0 0.0
        %1601 = vmatprep.subr.mxu0 0.0
        %1602 = vmatpush1.xpose.msra.mxu0 0.0
        %1603 = vmatprep.subr.mxu0 0.0
        %1604 = vmatpush1.xpose.msra.mxu0 0.0
        %1605 = vmatprep.subr.mxu0 0.0
        %1606 = vmatpush1.xpose.msra.mxu0 0.0
        %1607 = vmatprep.subr.mxu0 0.0
        %1608 = vmatpush1.xpose.msra.mxu0 0.0
        %1609 = vmatprep.subr.mxu0 0.0
        %1610 = vmatpush1.xpose.msra.mxu0 0.0
        %1611 = vmatprep.subr.mxu0 0.0
        %1612 = vmatpush1.xpose.msra.mxu0 0.0
        %1613 = vmatprep.subr.mxu0 0.0
        %1614 = vmatpush1.xpose.msra.mxu0 0.0
        %1615 = vmatprep.subr.mxu0 0.0
        %1616 = vmatpush1.xpose.msra.mxu0 0.0
        %1617 = vmatprep.subr.mxu0 0.0
        %1618 = vmatpush1.xpose.msra.mxu0 0.0
        %1619 = vmatprep.subr.mxu0 0.0
        %1620 = vmatpush1.xpose.msra.mxu0 0.0
        %1621 = vmatprep.subr.mxu0 0.0
        %1622 = vmatpush1.xpose.msra.mxu0 0.0
        %1623 = vmatprep.subr.mxu0 0.0
        %1624 = vmatpush1.xpose.msra.mxu0 0.0
        %1625 = vmatprep.subr.mxu0 0.0
        %1626 = vmatpush1.xpose.msra.mxu0 0.0
        %1627 = vmatprep.subr.mxu0 0.0
        %1628 = vmatpush1.xpose.msra.mxu0 0.0
        %1629 = vmatprep.subr.mxu0 0.0
        %1630 = vmatpush1.xpose.msra.mxu0 0.0
        %1631 = vmatprep.subr.mxu0 0.0
        %1632 = vmatpush1.xpose.msra.mxu0 0.0
        %1633 = vmatprep.subr.mxu0 0.0
        %1634 = vmatpush1.xpose.msra.mxu0 0.0
        %1635 = vmatprep.subr.mxu0 0.0
        %1636 = vmatpush1.xpose.msra.mxu0 0.0
        %1637 = vmatprep.subr.mxu0 0.0
        %1638 = vmatpush1.xpose.msra.mxu0 0.0
        %1639 = vmatprep.subr.mxu0 0.0
        %1640 = vmatpush1.xpose.msra.mxu0 0.0
        %1641 = vmatprep.subr.mxu0 0.0
        %1642 = vmatpush1.xpose.msra.mxu0 0.0
        %1643 = vmatprep.subr.mxu0 0.0
        %1644 = vmatpush1.xpose.msra.mxu0 0.0
        %1645 = vmatprep.mubr.f32.mxu0 0.0
        %1646 = vmatmul.mubr.f32.gmra.mrb[0].mxu0 %v1577
        %v1647 = vpop.f32.mrb[0].mxu0
        %v1648 = vadd.f32 0.0, %v1647
        %v1649 = vpop.f32.mrb[0].mxu0
        %1650 = vdwg.mxu0
        %v1651 = vmul.f32 %v1648, 0.35355338
        %v1652 = vadd.f32 %v1651, %v1149
        %v1653 = vsel %vm1069, %v1652, -inf
        %1654 = vmax.xlane.f32.xlu0 %v1653
        %v1655 = vpop.xlane.xlu0 %1654
        %v1656 = vsub.f32 %v1652, %v1655
        %v1657 = vmul.f32 %v1656, 1.442695
        %v1658 = vpow.pop %v1657
        %v1659 = vsel %vm1069, %v1658, 0.0
        %1660 = vadd.xlane.f32.xlu0 %v1659
        %v1661 = vpop.xlane.xlu0 %1660
        %v1662 = vrcp.pop %v1661
        %v1663 = vmul.f32 %v1658, %v1662
        %1664 = vrot.lane.b32.xlu0 %v1062, 40
        %v1665 = vpop.permute.xlu0 %1664
        %v1668 = vsel %vm1069, %v1663, 0
        %1670 = vmatprep.subr.mxu0 0.0
        %1671 = vmatpush1.msra.mxu0 %v1665
        %1672 = vmatprep.subr.mxu0 0.0
        %1673 = vmatpush1.msra.mxu0 0.0
        %1674 = vmatprep.subr.mxu0 0.0
        %1675 = vmatpush1.msra.mxu0 0.0
        %1676 = vmatprep.subr.mxu0 0.0
        %1677 = vmatpush1.msra.mxu0 0.0
        %1678 = vmatprep.subr.mxu0 0.0
        %1679 = vmatpush1.msra.mxu0 0.0
        %1680 = vmatprep.subr.mxu0 0.0
        %1681 = vmatpush1.msra.mxu0 0.0
        %1682 = vmatprep.subr.mxu0 0.0
        %1683 = vmatpush1.msra.mxu0 0.0
        %1684 = vmatprep.subr.mxu0 0.0
        %1685 = vmatpush1.msra.mxu0 0.0
        %1686 = vmatprep.subr.mxu0 0.0
        %1687 = vmatpush1.msra.mxu0 0.0
        %1688 = vmatprep.subr.mxu0 0.0
        %1689 = vmatpush1.msra.mxu0 0.0
        %1690 = vmatprep.subr.mxu0 0.0
        %1691 = vmatpush1.msra.mxu0 0.0
        %1692 = vmatprep.subr.mxu0 0.0
        %1693 = vmatpush1.msra.mxu0 0.0
        %1694 = vmatprep.subr.mxu0 0.0
        %1695 = vmatpush1.msra.mxu0 0.0
        %1696 = vmatprep.subr.mxu0 0.0
        %1697 = vmatpush1.msra.mxu0 0.0
        %1698 = vmatprep.subr.mxu0 0.0
        %1699 = vmatpush1.msra.mxu0 0.0
        %1700 = vmatprep.subr.mxu0 0.0
        %1701 = vmatpush1.msra.mxu0 0.0
        %1702 = vmatprep.subr.mxu0 0.0
        %1703 = vmatpush1.msra.mxu0 0.0
        %1704 = vmatprep.subr.mxu0 0.0
        %1705 = vmatpush1.msra.mxu0 0.0
        %1706 = vmatprep.subr.mxu0 0.0
        %1707 = vmatpush1.msra.mxu0 0.0
        %1708 = vmatprep.subr.mxu0 0.0
        %1709 = vmatpush1.msra.mxu0 0.0
        %1710 = vmatprep.subr.mxu0 0.0
        %1711 = vmatpush1.msra.mxu0 0.0
        %1712 = vmatprep.subr.mxu0 0.0
        %1713 = vmatpush1.msra.mxu0 0.0
        %1714 = vmatprep.subr.mxu0 0.0
        %1715 = vmatpush1.msra.mxu0 0.0
        %1716 = vmatprep.subr.mxu0 0.0
        %1717 = vmatpush1.msra.mxu0 0.0
        %1718 = vmatprep.subr.mxu0 0.0
        %1719 = vmatpush1.msra.mxu0 0.0
        %1720 = vmatprep.subr.mxu0 0.0
        %1721 = vmatpush1.msra.mxu0 0.0
        %1722 = vmatprep.subr.mxu0 0.0
        %1723 = vmatpush1.msra.mxu0 0.0
        %1724 = vmatprep.subr.mxu0 0.0
        %1725 = vmatpush1.msra.mxu0 0.0
        %1726 = vmatprep.subr.mxu0 0.0
        %1727 = vmatpush1.msra.mxu0 0.0
        %1728 = vmatprep.subr.mxu0 0.0
        %1729 = vmatpush1.msra.mxu0 0.0
        %1730 = vmatprep.subr.mxu0 0.0
        %1731 = vmatpush1.msra.mxu0 0.0
        %1732 = vmatprep.subr.mxu0 0.0
        %1733 = vmatpush1.msra.mxu0 0.0
        %1734 = vmatprep.mubr.f32.mxu0 0.0
        %1735 = vmatmul.mubr.f32.gmra.mrb[0].mxu0 %v1668
        %v1736 = vpop.f32.mrb[0].mxu0
        %v1737 = vadd.f32 0.0, %v1736
        %v1738 = vpop.f32.mrb[0].mxu0
        %1739 = vdwg.mxu0
        %1741 = vrot.lane.b32.xlu0 %v1403, 8
        %v1742 = vpop.permute.xlu0 %1741
        %1745 = vrot.lane.b32.xlu0 %v1570, 16
        %v1746 = vpop.permute.xlu0 %1745
        %1749 = vrot.lane.b32.xlu0 %v1737, 24
        %v1750 = vpop.permute.xlu0 %1749
        %v1752 = vsel %vm1069, %v1236, %v1742
        %vm1753 = vcmask 130048
        %v1754 = vsel %vm1753, %v1752, %v1746
        %vm1755 = vcmask 195584
        %v1756 = vsel %vm1755, %v1754, %v1750
        %v1757 = vld [vmem:[%s842] sm:$0xff]
        %v1758 = vld [vmem:[%s842 + $0x8] sm:$0xff]
        %v1759 = vld [vmem:[%s842 + $0x10] sm:$0xff]
        %v1760 = vld [vmem:[%s842 + $0x18] sm:$0xff]
        %v1761 = vld [vmem:[%s845] sm:$0x1]
        %v1763 = vlaneseq
        %v1764 = vshrl.u32 %v1763, 7
        %v1765 = vsub.s32 0, %v1764
        %v1766 = vrot.slane %v1761, %v1765
        %v1769 = vsel %vm991, %v1756, 0
        %1771 = vmatprep.subr.mxu0 0.0
        %1772 = vmatpush1.msra.mxu0 %v1757
        %1773 = vmatprep.subr.mxu0 0.0
        %1774 = vmatpush1.msra.mxu0 %v1758
        %1775 = vmatprep.subr.mxu0 0.0
        %1776 = vmatpush1.msra.mxu0 %v1759
        %1777 = vmatprep.subr.mxu0 0.0
        %1778 = vmatpush1.msra.mxu0 %v1760
        %1779 = vmatprep.subr.mxu0 0.0
        %1780 = vmatpush1.msra.mxu0 0.0
        %1781 = vmatprep.subr.mxu0 0.0
        %1782 = vmatpush1.msra.mxu0 0.0
        %1783 = vmatprep.subr.mxu0 0.0
        %1784 = vmatpush1.msra.mxu0 0.0
        %1785 = vmatprep.subr.mxu0 0.0
        %1786 = vmatpush1.msra.mxu0 0.0
        %1787 = vmatprep.subr.mxu0 0.0
        %1788 = vmatpush1.msra.mxu0 0.0
        %1789 = vmatprep.subr.mxu0 0.0
        %1790 = vmatpush1.msra.mxu0 0.0
        %1791 = vmatprep.subr.mxu0 0.0
        %1792 = vmatpush1.msra.mxu0 0.0
        %1793 = vmatprep.subr.mxu0 0.0
        %1794 = vmatpush1.msra.mxu0 0.0
        %1795 = vmatprep.subr.mxu0 0.0
        %1796 = vmatpush1.msra.mxu0 0.0
        %1797 = vmatprep.subr.mxu0 0.0
        %1798 = vmatpush1.msra.mxu0 0.0
        %1799 = vmatprep.subr.mxu0 0.0
        %1800 = vmatpush1.msra.mxu0 0.0
        %1801 = vmatprep.subr.mxu0 0.0
        %1802 = vmatpush1.msra.mxu0 0.0
        %1803 = vmatprep.subr.mxu0 0.0
        %1804 = vmatpush1.msra.mxu0 0.0
        %1805 = vmatprep.subr.mxu0 0.0
        %1806 = vmatpush1.msra.mxu0 0.0
        %1807 = vmatprep.subr.mxu0 0.0
        %1808 = vmatpush1.msra.mxu0 0.0
        %1809 = vmatprep.subr.mxu0 0.0
        %1810 = vmatpush1.msra.mxu0 0.0
        %1811 = vmatprep.subr.mxu0 0.0
        %1812 = vmatpush1.msra.mxu0 0.0
        %1813 = vmatprep.subr.mxu0 0.0
        %1814 = vmatpush1.msra.mxu0 0.0
        %1815 = vmatprep.subr.mxu0 0.0
        %1816 = vmatpush1.msra.mxu0 0.0
        %1817 = vmatprep.subr.mxu0 0.0
        %1818 = vmatpush1.msra.mxu0 0.0
        %1819 = vmatprep.subr.mxu0 0.0
        %1820 = vmatpush1.msra.mxu0 0.0
        %1821 = vmatprep.subr.mxu0 0.0
        %1822 = vmatpush1.msra.mxu0 0.0
        %1823 = vmatprep.subr.mxu0 0.0
        %1824 = vmatpush1.msra.mxu0 0.0
        %1825 = vmatprep.subr.mxu0 0.0
        %1826 = vmatpush1.msra.mxu0 0.0
        %1827 = vmatprep.subr.mxu0 0.0
        %1828 = vmatpush1.msra.mxu0 0.0
        %1829 = vmatprep.subr.mxu0 0.0
        %1830 = vmatpush1.msra.mxu0 0.0
        %1831 = vmatprep.subr.mxu0 0.0
        %1832 = vmatpush1.msra.mxu0 0.0
        %1833 = vmatprep.subr.mxu0 0.0
        %1834 = vmatpush1.msra.mxu0 0.0
        %1835 = vmatprep.mubr.f32.mxu0 0.0
        %1836 = vmatmul.mubr.f32.gmra.mrb[0].mxu0 %v1769
        %v1837 = vpop.f32.mrb[0].mxu0
        %v1838 = vadd.f32 %v1766, %v1837
        %v1839 = vpop.f32.mrb[0].mxu0
        %1840 = vdwg.mxu0
        %v1841 = vadd.f32 %v979, %v1838
        %v1842 = vld [vmem:[%s848] sm:$0x1]
        %v1843 = vld [vmem:[%s851] sm:$0x1]
        %v1844 = vsel %vm991, %v1841, 0.0
        %1845 = vadd.xlane.f32.xlu0 %v1844
        %v1846 = vpop.xlane.xlu0 %1845
        %v1847 = vrcp.pop 32.0
        %v1848 = vmul.f32 %v1846, %v1847
        %v1849 = vsub.f32 %v1841, %v1848
        %v1850 = vmul.f32 %v1849, %v1849
        %v1851 = vsel %vm991, %v1850, 0.0
        %1852 = vadd.xlane.f32.xlu0 %v1851
        %v1853 = vpop.xlane.xlu0 %1852
        %v1854 = vmul.f32 %v1853, %v1847
        %v1855 = vadd.f32 %v1854, 1e-05
        %v1856 = vrsqrt.pop %v1855
        %v1857 = vmul.f32 %v1849, %v1856
        %v1859 = vlaneseq
        %v1860 = vshrl.u32 %v1859, 7
        %v1861 = vsub.s32 0, %v1860
        %v1862 = vrot.slane %v1842, %v1861
        %v1864 = vmul.f32 %v1857, %v1862
        %v1866 = vlaneseq
        %v1867 = vshrl.u32 %v1866, 7
        %v1868 = vsub.s32 0, %v1867
        %v1869 = vrot.slane %v1843, %v1868
        %v1871 = vadd.f32 %v1864, %v1869
        %v1872 = vld [vmem:[%s856] sm:$0xff]
        %v1873 = vld [vmem:[%s856 + $0x8] sm:$0xff]
        %v1874 = vld [vmem:[%s856 + $0x10] sm:$0xff]
        %v1875 = vld [vmem:[%s856 + $0x18] sm:$0xff]
        %v1876 = vld [vmem:[%s721] sm:$0x1]
        %v1878 = vlaneseq
        %v1879 = vshrl.u32 %v1878, 7
        %v1880 = vsub.s32 0, %v1879
        %v1881 = vrot.slane %v1876, %v1880
        %v1884 = vsel %vm991, %v1871, 0
        %1886 = vmatprep.subr.mxu0 0.0
        %1887 = vmatpush1.msra.mxu0 %v1872
        %1888 = vmatprep.subr.mxu0 0.0
        %1889 = vmatpush1.msra.mxu0 %v1873
        %1890 = vmatprep.subr.mxu0 0.0
        %1891 = vmatpush1.msra.mxu0 %v1874
        %1892 = vmatprep.subr.mxu0 0.0
        %1893 = vmatpush1.msra.mxu0 %v1875
        %1894 = vmatprep.subr.mxu0 0.0
        %1895 = vmatpush1.msra.mxu0 0.0
        %1896 = vmatprep.subr.mxu0 0.0
        %1897 = vmatpush1.msra.mxu0 0.0
        %1898 = vmatprep.subr.mxu0 0.0
        %1899 = vmatpush1.msra.mxu0 0.0
        %1900 = vmatprep.subr.mxu0 0.0
        %1901 = vmatpush1.msra.mxu0 0.0
        %1902 = vmatprep.subr.mxu0 0.0
        %1903 = vmatpush1.msra.mxu0 0.0
        %1904 = vmatprep.subr.mxu0 0.0
        %1905 = vmatpush1.msra.mxu0 0.0
        %1906 = vmatprep.subr.mxu0 0.0
        %1907 = vmatpush1.msra.mxu0 0.0
        %1908 = vmatprep.subr.mxu0 0.0
        %1909 = vmatpush1.msra.mxu0 0.0
        %1910 = vmatprep.subr.mxu0 0.0
        %1911 = vmatpush1.msra.mxu0 0.0
        %1912 = vmatprep.subr.mxu0 0.0
        %1913 = vmatpush1.msra.mxu0 0.0
        %1914 = vmatprep.subr.mxu0 0.0
        %1915 = vmatpush1.msra.mxu0 0.0
        %1916 = vmatprep.subr.mxu0 0.0
        %1917 = vmatpush1.msra.mxu0 0.0
        %1918 = vmatprep.subr.mxu0 0.0
        %1919 = vmatpush1.msra.mxu0 0.0
        %1920 = vmatprep.subr.mxu0 0.0
        %1921 = vmatpush1.msra.mxu0 0.0
        %1922 = vmatprep.subr.mxu0 0.0
        %1923 = vmatpush1.msra.mxu0 0.0
        %1924 = vmatprep.subr.mxu0 0.0
        %1925 = vmatpush1.msra.mxu0 0.0
        %1926 = vmatprep.subr.mxu0 0.0
        %1927 = vmatpush1.msra.mxu0 0.0
        %1928 = vmatprep.subr.mxu0 0.0
        %1929 = vmatpush1.msra.mxu0 0.0
        %1930 = vmatprep.subr.mxu0 0.0
        %1931 = vmatpush1.msra.mxu0 0.0
        %1932 = vmatprep.subr.mxu0 0.0
        %1933 = vmatpush1.msra.mxu0 0.0
        %1934 = vmatprep.subr.mxu0 0.0
        %1935 = vmatpush1.msra.mxu0 0.0
        %1936 = vmatprep.subr.mxu0 0.0
        %1937 = vmatpush1.msra.mxu0 0.0
        %1938 = vmatprep.subr.mxu0 0.0
        %1939 = vmatpush1.msra.mxu0 0.0
        %1940 = vmatprep.subr.mxu0 0.0
        %1941 = vmatpush1.msra.mxu0 0.0
        %1942 = vmatprep.subr.mxu0 0.0
        %1943 = vmatpush1.msra.mxu0 0.0
        %1944 = vmatprep.subr.mxu0 0.0
        %1945 = vmatpush1.msra.mxu0 0.0
        %1946 = vmatprep.subr.mxu0 0.0
        %1947 = vmatpush1.msra.mxu0 0.0
        %1948 = vmatprep.subr.mxu0 0.0
        %1949 = vmatpush1.msra.mxu0 0.0
        %1950 = vmatprep.mubr.f32.mxu0 0.0
        %1951 = vmatmul.mubr.f32.gmra.mrb[0].mxu0 %v1884
        %v1952 = vpop.f32.mrb[0].mxu0
        %v1953 = vadd.f32 %v1881, %v1952
        %v1954 = vpop.f32.mrb[0].mxu0
        %1955 = vdwg.mxu0
        %v1956 = vmax.f32 %v1953, 0.0
        %v1957 = vld [vmem:[%s861] sm:$0xff]
        %v1958 = vld [vmem:[%s861 + $0x8] sm:$0xff]
        %v1959 = vld [vmem:[%s861 + $0x10] sm:$0xff]
        %v1960 = vld [vmem:[%s861 + $0x18] sm:$0xff]
        %v1961 = vld [vmem:[%s861 + $0x20] sm:$0xff]
        %v1962 = vld [vmem:[%s861 + $0x28] sm:$0xff]
        %v1963 = vld [vmem:[%s861 + $0x30] sm:$0xff]
        %v1964 = vld [vmem:[%s861 + $0x38] sm:$0xff]
        %v1965 = vld [vmem:[%s864] sm:$0x1]
        %v1967 = vlaneseq
        %v1968 = vshrl.u32 %v1967, 7
        %v1969 = vsub.s32 0, %v1968
        %v1970 = vrot.slane %v1965, %v1969
        %vm1972 = vcmask 523264
        %v1974 = vsel %vm1972, %v1956, 0
        %1976 = vmatprep.subr.mxu0 0.0
        %1977 = vmatpush1.msra.mxu0 %v1957
        %1978 = vmatprep.subr.mxu0 0.0
        %1979 = vmatpush1.msra.mxu0 %v1958
        %1980 = vmatprep.subr.mxu0 0.0
        %1981 = vmatpush1.msra.mxu0 %v1959
        %1982 = vmatprep.subr.mxu0 0.0
        %1983 = vmatpush1.msra.mxu0 %v1960
        %1984 = vmatprep.subr.mxu0 0.0
        %1985 = vmatpush1.msra.mxu0 %v1961
        %1986 = vmatprep.subr.mxu0 0.0
        %1987 = vmatpush1.msra.mxu0 %v1962
        %1988 = vmatprep.subr.mxu0 0.0
        %1989 = vmatpush1.msra.mxu0 %v1963
        %1990 = vmatprep.subr.mxu0 0.0
        %1991 = vmatpush1.msra.mxu0 %v1964
        %1992 = vmatprep.subr.mxu0 0.0
        %1993 = vmatpush1.msra.mxu0 0.0
        %1994 = vmatprep.subr.mxu0 0.0
        %1995 = vmatpush1.msra.mxu0 0.0
        %1996 = vmatprep.subr.mxu0 0.0
        %1997 = vmatpush1.msra.mxu0 0.0
        %1998 = vmatprep.subr.mxu0 0.0
        %1999 = vmatpush1.msra.mxu0 0.0
        %2000 = vmatprep.subr.mxu0 0.0
        %2001 = vmatpush1.msra.mxu0 0.0
        %2002 = vmatprep.subr.mxu0 0.0
        %2003 = vmatpush1.msra.mxu0 0.0
        %2004 = vmatprep.subr.mxu0 0.0
        %2005 = vmatpush1.msra.mxu0 0.0
        %2006 = vmatprep.subr.mxu0 0.0
        %2007 = vmatpush1.msra.mxu0 0.0
        %2008 = vmatprep.subr.mxu0 0.0
        %2009 = vmatpush1.msra.mxu0 0.0
        %2010 = vmatprep.subr.mxu0 0.0
        %2011 = vmatpush1.msra.mxu0 0.0
        %2012 = vmatprep.subr.mxu0 0.0
        %2013 = vmatpush1.msra.mxu0 0.0
        %2014 = vmatprep.subr.mxu0 0.0
        %2015 = vmatpush1.msra.mxu0 0.0
        %2016 = vmatprep.subr.mxu0 0.0
        %2017 = vmatpush1.msra.mxu0 0.0
        %2018 = vmatprep.subr.mxu0 0.0
        %2019 = vmatpush1.msra.mxu0 0.0
        %2020 = vmatprep.subr.mxu0 0.0
        %2021 = vmatpush1.msra.mxu0 0.0
        %2022 = vmatprep.subr.mxu0 0.0
        %2023 = vmatpush1.msra.mxu0 0.0
        %2024 = vmatprep.subr.mxu0 0.0
        %2025 = vmatpush1.msra.mxu0 0.0
        %2026 = vmatprep.subr.mxu0 0.0
        %2027 = vmatpush1.msra.mxu0 0.0
        %2028 = vmatprep.subr.mxu0 0.0
        %2029 = vmatpush1.msra.mxu0 0.0
        %2030 = vmatprep.subr.mxu0 0.0
        %2031 = vmatpush1.msra.mxu0 0.0
        %2032 = vmatprep.subr.mxu0 0.0
        %2033 = vmatpush1.msra.mxu0 0.0
        %2034 = vmatprep.subr.mxu0 0.0
        %2035 = vmatpush1.msra.mxu0 0.0
        %2036 = vmatprep.subr.mxu0 0.0
        %2037 = vmatpush1.msra.mxu0 0.0
        %2038 = vmatprep.subr.mxu0 0.0
        %2039 = vmatpush1.msra.mxu0 0.0
        %2040 = vmatprep.mubr.f32.mxu0 0.0
        %2041 = vmatmul.mubr.f32.gmra.mrb[0].mxu0 %v1974
        %v2042 = vpop.f32.mrb[0].mxu0
        %v2043 = vadd.f32 %v1970, %v2042
        %v2044 = vpop.f32.mrb[0].mxu0
        %2045 = vdwg.mxu0
        %v2046 = vadd.f32 %v1871, %v2043
        %v2047 = vld [vmem:[%s867] sm:$0x1]
        %v2048 = vld [vmem:[%s870] sm:$0x1]
        %v2049 = vsel %vm991, %v2046, 0.0
        %2050 = vadd.xlane.f32.xlu0 %v2049
        %v2051 = vpop.xlane.xlu0 %2050
        %v2052 = vmul.f32 %v2051, %v1847
        %v2053 = vsub.f32 %v2046, %v2052
        %v2054 = vmul.f32 %v2053, %v2053
        %v2055 = vsel %vm991, %v2054, 0.0
        %2056 = vadd.xlane.f32.xlu0 %v2055
        %v2057 = vpop.xlane.xlu0 %2056
        %v2058 = vmul.f32 %v2057, %v1847
        %v2059 = vadd.f32 %v2058, 1e-05
        %v2060 = vrsqrt.pop %v2059
        %v2061 = vmul.f32 %v2053, %v2060
        %v2063 = vlaneseq
        %v2064 = vshrl.u32 %v2063, 7
        %v2065 = vsub.s32 0, %v2064
        %v2066 = vrot.slane %v2047, %v2065
        %v2068 = vmul.f32 %v2061, %v2066
        %v2070 = vlaneseq
        %v2071 = vshrl.u32 %v2070, 7
        %v2072 = vsub.s32 0, %v2071
        %v2073 = vrot.slane %v2048, %v2072
        %v2075 = vadd.f32 %v2068, %v2073
        %2076 = vst.msk [vmem:[#allocation2] sm:$0xff] %vm991, %v2075
        %p2077 = scmp.eq.s32.totalorder %s40, 1
        // Predicated region
        $region113: #{crystal_transformer_forward.1} parent=99 // pred_check
          %p2078 = pneg %p2077
        $region114: #{crystal_transformer_forward.1} parent=99 // pred_check_branch
          %2080 = sbr.rel (%p2078) target = $region116
        $region115: #{crystal_transformer_forward.1} parent=99 // pred_region
          %v2081 = vld [vmem:[%s16] sm:$0xff]
          %v2082 = vld [vmem:[%s16 + $0x8] sm:$0xff]
          %v2083 = vld [vmem:[%s16 + $0x10] sm:$0xff]
          %v2084 = vld [vmem:[%s16 + $0x18] sm:$0xff]
          %v2085 = vld [vmem:[%s17] sm:$0x1]
          %v2087 = vsel %vm991, %v2075, 0
          %2089 = vmatprep.subr.mxu0 0.0
          %2090 = vmatpush1.msra.mxu0 %v2081
          %2091 = vmatprep.subr.mxu0 0.0
          %2092 = vmatpush1.msra.mxu0 %v2082
          %2093 = vmatprep.subr.mxu0 0.0
          %2094 = vmatpush1.msra.mxu0 %v2083
          %2095 = vmatprep.subr.mxu0 0.0
          %2096 = vmatpush1.msra.mxu0 %v2084
          %2097 = vmatprep.subr.mxu0 0.0
          %2098 = vmatpush1.msra.mxu0 0.0
          %2099 = vmatprep.subr.mxu0 0.0
          %2100 = vmatpush1.msra.mxu0 0.0
          %2101 = vmatprep.subr.mxu0 0.0
          %2102 = vmatpush1.msra.mxu0 0.0
          %2103 = vmatprep.subr.mxu0 0.0
          %2104 = vmatpush1.msra.mxu0 0.0
          %2105 = vmatprep.subr.mxu0 0.0
          %2106 = vmatpush1.msra.mxu0 0.0
          %2107 = vmatprep.subr.mxu0 0.0
          %2108 = vmatpush1.msra.mxu0 0.0
          %2109 = vmatprep.subr.mxu0 0.0
          %2110 = vmatpush1.msra.mxu0 0.0
          %2111 = vmatprep.subr.mxu0 0.0
          %2112 = vmatpush1.msra.mxu0 0.0
          %2113 = vmatprep.subr.mxu0 0.0
          %2114 = vmatpush1.msra.mxu0 0.0
          %2115 = vmatprep.subr.mxu0 0.0
          %2116 = vmatpush1.msra.mxu0 0.0
          %2117 = vmatprep.subr.mxu0 0.0
          %2118 = vmatpush1.msra.mxu0 0.0
          %2119 = vmatprep.subr.mxu0 0.0
          %2120 = vmatpush1.msra.mxu0 0.0
          %2121 = vmatprep.subr.mxu0 0.0
          %2122 = vmatpush1.msra.mxu0 0.0
          %2123 = vmatprep.subr.mxu0 0.0
          %2124 = vmatpush1.msra.mxu0 0.0
          %2125 = vmatprep.subr.mxu0 0.0
          %2126 = vmatpush1.msra.mxu0 0.0
          %2127 = vmatprep.subr.mxu0 0.0
          %2128 = vmatpush1.msra.mxu0 0.0
          %2129 = vmatprep.subr.mxu0 0.0
          %2130 = vmatpush1.msra.mxu0 0.0
          %2131 = vmatprep.subr.mxu0 0.0
          %2132 = vmatpush1.msra.mxu0 0.0
          %2133 = vmatprep.subr.mxu0 0.0
          %2134 = vmatpush1.msra.mxu0 0.0
          %2135 = vmatprep.subr.mxu0 0.0
          %2136 = vmatpush1.msra.mxu0 0.0
          %2137 = vmatprep.subr.mxu0 0.0
          %2138 = vmatpush1.msra.mxu0 0.0
          %2139 = vmatprep.subr.mxu0 0.0
          %2140 = vmatpush1.msra.mxu0 0.0
          %2141 = vmatprep.subr.mxu0 0.0
          %2142 = vmatpush1.msra.mxu0 0.0
          %2143 = vmatprep.subr.mxu0 0.0
          %2144 = vmatpush1.msra.mxu0 0.0
          %2145 = vmatprep.subr.mxu0 0.0
          %2146 = vmatpush1.msra.mxu0 0.0
          %2147 = vmatprep.subr.mxu0 0.0
          %2148 = vmatpush1.msra.mxu0 0.0
          %2149 = vmatprep.subr.mxu0 0.0
          %2150 = vmatpush1.msra.mxu0 0.0
          %2151 = vmatprep.subr.mxu0 0.0
          %2152 = vmatpush1.msra.mxu0 0.0
          %2153 = vmatprep.mubr.f32.mxu0 0.0
          %2154 = vmatmul.mubr.f32.gmra.mrb[0].mxu0 %v2087
          %v2155 = vpop.f32.mrb[0].mxu0
          %v2156 = vadd.f32 %v2085, %v2155
          %v2157 = vpop.f32.mrb[0].mxu0
          %2158 = vdwg.mxu0
          %v2159 = vmax.f32 %v2156, 0.0
          %v2160 = vld [vmem:[%s18] sm:$0xff]
          %v2161 = vld [vmem:[%s18 + $0x8] sm:$0xff]
          %v2162 = vld [vmem:[%s18 + $0x10] sm:$0xff]
          %v2163 = vld [vmem:[%s18 + $0x18] sm:$0xff]
          %v2164 = vld [vmem:[%s18 + $0x20] sm:$0xff]
          %v2165 = vld [vmem:[%s18 + $0x28] sm:$0xff]
          %v2166 = vld [vmem:[%s18 + $0x30] sm:$0xff]
          %v2167 = vld [vmem:[%s18 + $0x38] sm:$0xff]
          %v2168 = vld [vmem:[%s19] sm:$0x1]
          %v2170 = vsel %vm1972, %v2159, 0
          %2172 = vmatprep.subr.mxu0 0.0
          %2173 = vmatpush1.msra.mxu0 %v2160
          %2174 = vmatprep.subr.mxu0 0.0
          %2175 = vmatpush1.msra.mxu0 %v2161
          %2176 = vmatprep.subr.mxu0 0.0
          %2177 = vmatpush1.msra.mxu0 %v2162
          %2178 = vmatprep.subr.mxu0 0.0
          %2179 = vmatpush1.msra.mxu0 %v2163
          %2180 = vmatprep.subr.mxu0 0.0
          %2181 = vmatpush1.msra.mxu0 %v2164
          %2182 = vmatprep.subr.mxu0 0.0
          %2183 = vmatpush1.msra.mxu0 %v2165
          %2184 = vmatprep.subr.mxu0 0.0
          %2185 = vmatpush1.msra.mxu0 %v2166
          %2186 = vmatprep.subr.mxu0 0.0
          %2187 = vmatpush1.msra.mxu0 %v2167
          %2188 = vmatprep.subr.mxu0 0.0
          %2189 = vmatpush1.msra.mxu0 0.0
          %2190 = vmatprep.subr.mxu0 0.0
          %2191 = vmatpush1.msra.mxu0 0.0
          %2192 = vmatprep.subr.mxu0 0.0
          %2193 = vmatpush1.msra.mxu0 0.0
          %2194 = vmatprep.subr.mxu0 0.0
          %2195 = vmatpush1.msra.mxu0 0.0
          %2196 = vmatprep.subr.mxu0 0.0
          %2197 = vmatpush1.msra.mxu0 0.0
          %2198 = vmatprep.subr.mxu0 0.0
          %2199 = vmatpush1.msra.mxu0 0.0
          %2200 = vmatprep.subr.mxu0 0.0
          %2201 = vmatpush1.msra.mxu0 0.0
          %2202 = vmatprep.subr.mxu0 0.0
          %2203 = vmatpush1.msra.mxu0 0.0
          %2204 = vmatprep.subr.mxu0 0.0
          %2205 = vmatpush1.msra.mxu0 0.0
          %2206 = vmatprep.subr.mxu0 0.0
          %2207 = vmatpush1.msra.mxu0 0.0
          %2208 = vmatprep.subr.mxu0 0.0
          %2209 = vmatpush1.msra.mxu0 0.0
          %2210 = vmatprep.subr.mxu0 0.0
          %2211 = vmatpush1.msra.mxu0 0.0
          %2212 = vmatprep.subr.mxu0 0.0
          %2213 = vmatpush1.msra.mxu0 0.0
          %2214 = vmatprep.subr.mxu0 0.0
          %2215 = vmatpush1.msra.mxu0 0.0
          %2216 = vmatprep.subr.mxu0 0.0
          %2217 = vmatpush1.msra.mxu0 0.0
          %2218 = vmatprep.subr.mxu0 0.0
          %2219 = vmatpush1.msra.mxu0 0.0
          %2220 = vmatprep.subr.mxu0 0.0
          %2221 = vmatpush1.msra.mxu0 0.0
          %2222 = vmatprep.subr.mxu0 0.0
          %2223 = vmatpush1.msra.mxu0 0.0
          %2224 = vmatprep.subr.mxu0 0.0
          %2225 = vmatpush1.msra.mxu0 0.0
          %2226 = vmatprep.subr.mxu0 0.0
          %2227 = vmatpush1.msra.mxu0 0.0
          %2228 = vmatprep.subr.mxu0 0.0
          %2229 = vmatpush1.msra.mxu0 0.0
          %2230 = vmatprep.subr.mxu0 0.0
          %2231 = vmatpush1.msra.mxu0 0.0
          %2232 = vmatprep.subr.mxu0 0.0
          %2233 = vmatpush1.msra.mxu0 0.0
          %2234 = vmatprep.subr.mxu0 0.0
          %2235 = vmatpush1.msra.mxu0 0.0
          %2236 = vmatprep.mubr.f32.mxu0 0.0
          %2237 = vmatmul.mubr.f32.gmra.mrb[0].mxu0 %v2170
          %v2238 = vpop.f32.mrb[0].mxu0
          %v2239 = vadd.f32 %v2168, %v2238
          %v2240 = vpop.f32.mrb[0].mxu0
          %2241 = vdwg.mxu0
          %2242 = vst [vmem:[%s873] sm:$0x1] %v2239
        $region116: #{crystal_transformer_forward.1} parent=99 // pred_fallthru
          _
        %p2243 = scmp.lt.s32.totalorder %s39, 1
        %s2244 = scalar_select %p2243, %s39, 1
        %s2245 = scalar_lea.vmem %s20, %s2244
        // Predicated region
        $region117: #{crystal_transformer_forward.1} parent=99 // pred_check
          %p2246 = pneg %p555
        $region118: #{crystal_transformer_forward.1} parent=99 // pred_check_branch
          %2248 = sbr.rel (%p2246) target = $region120
        $region119: #{crystal_transformer_forward.1} parent=99 // pred_region
          _
        $region120: #{crystal_transformer_forward.1} parent=99 // pred_fallthru
          _
      $region100: #{crystal_transformer_forward.1} parent=5 // pred_fallthru
        _
      %p2249 = scmp.le.s32.totalorder 2, %s30
      // Predicated region
      $region121: #{crystal_transformer_forward.1} parent=5 // pred_check
        %p2250 = pneg %p2249
      $region122: #{crystal_transformer_forward.1} parent=5 // pred_check_branch
        %2252 = sbr.rel (%p2250) target = $region124
      $region123: #{crystal_transformer_forward.1} parent=5 // pred_region
        %s2253 = ssub.s32 %s30, 2
        // Predicated region
        $region125: #{crystal_transformer_forward.1} parent=123 // pred_check
          %p2254 = pneg %p561
        $region126: #{crystal_transformer_forward.1} parent=123 // pred_check_branch
          %2256 = sbr.rel (%p2254) target = $region128
        $region127: #{crystal_transformer_forward.1} parent=123 // pred_region
          %p2257 = scmp.lt.s32.totalorder %s41, 1
          %s2258 = scalar_select %p2257, %s41, 1
          %s2259 = scalar_lea.vmem %s20, %s2258
        $region128: #{crystal_transformer_forward.1} parent=123 // pred_fallthru
          _
      $region124: #{crystal_transformer_forward.1} parent=5 // pred_fallthru
        _
    $region6: #{crystal_transformer_forward.1} parent=1 // loop_footer
      %s34 = sadd.s32 1, %s30
    $region7: #{crystal_transformer_forward.1} parent=1 // loop_footer_branch
      %29 = sbr.rel target = $region3
    $region8: #{crystal_transformer_forward.1} parent=1 // loop_exit
      _
    %2260 = vsyncpa [#allocation4], 1
    %s2261 = scalar_lea.sflag [#allocation4], 1
    %2262 = vsyncpa %s2261, 1
    %2263 = vsyncpa [#allocation6], 1
    %s2264 = scalar_lea.sflag [#allocation6], 1
    %2265 = vsyncpa %s2264, 1

</llo_original>
